<compile_context>
chip_gen: v5e
topology: v5e:2x2
jax: 0.10.0
libtpu: 0.0.40
codegen_flags: <defaults>
</compile_context>

<pallas_src>
import functools

import jax
import jax.numpy as jnp
from jax import lax
from jax.experimental import pallas as pl
from jax.experimental.pallas import tpu as pltpu


# ----------------------------- fused Pallas kernel -----------------------------

def _encoder_block_kernel(x_ref, mask_ref,
                          wq_ref, bq_ref, wkv_ref, bkv_ref, wo_ref, bo_ref,
                          w1_ref, b1_ref, w2_ref, b2_ref,
                          g1_ref, bt1_ref, g2_ref, bt2_ref,
                          o_ref, ctx_ref,
                          *, heads, head_dim, eps, mxu_dtype):
    f32 = jnp.float32
    x = x_ref[...]                                           # (T, D) rows of this batch
    seq = x.shape[0]
    a_dim = heads * head_dim

    # Key mask for this batch, compare + broadcast hoisted out of the head loop.
    b_idx = pl.program_id(0)
    mrow = mask_ref[pl.ds(b_idx, 1), :]                      # (1, T)
    keep = jnp.broadcast_to(mrow > 0.0, (seq, seq))          # (T, T) bool, reused per head
    neg_fill = f32(-1e32)                                    # masked_softmax(memory_efficient)

    xm = x.astype(mxu_dtype)
    # Projections (1/scale already folded into wq/bq host-side).
    q = jnp.dot(xm, wq_ref[...].astype(mxu_dtype),
                preferred_element_type=f32) + bq_ref[...]    # (T, A)
    kv = jnp.dot(xm, wkv_ref[...].astype(mxu_dtype),
                 preferred_element_type=f32) + bkv_ref[...]  # (T, 2A)
    k = kv[:, :a_dim]
    v = kv[:, a_dim:]

    # Per-head attention; each head's output lands in a contiguous lane slice of ctx_ref.
    for h in range(heads):
        c0 = h * head_dim
        qh = q[:, c0:c0 + head_dim].astype(mxu_dtype)
        kh = k[:, c0:c0 + head_dim].astype(mxu_dtype)
        vh = v[:, c0:c0 + head_dim].astype(mxu_dtype)
        # scores: contract last dims directly -> no explicit kh.T transpose
        s = lax.dot_general(qh, kh, (((1,), (1,)), ((), ())),
                            preferred_element_type=f32)      # (T, T)
        s = jnp.where(keep, s, neg_fill)
        # softmax (row-wise), divide moved to reciprocal (approx=True at prod shapes)
        m_max = jnp.max(s, axis=-1, keepdims=True)
        e = jnp.exp(s - m_max)
        p = e * pl.reciprocal(jnp.sum(e, axis=-1, keepdims=True))
        ctx_ref[:, c0:c0 + head_dim] = jnp.dot(
            p.astype(mxu_dtype), vh, preferred_element_type=f32)

    # ONE fused output projection across all heads: (T, A) @ (A, D)
    attn = jnp.dot(ctx_ref[...].astype(mxu_dtype), wo_ref[...].astype(mxu_dtype),
                   preferred_element_type=f32) + bo_ref[...]

    # allennlp LayerNorm: g * (x - mean) / (std + eps) + b (population std, eps=1e-6)
    def layer_norm(t, g, beta):
        mean = jnp.mean(t, axis=-1, keepdims=True)
        var = jnp.mean(jnp.square(t - mean), axis=-1, keepdims=True)
        inv = pl.reciprocal(jnp.sqrt(var) + eps)             # exact; approx=True at prod
        return g * (t - mean) * inv + beta

    out1 = layer_norm(x + attn, g1_ref[...], bt1_ref[...])
    hmid = jnp.maximum(
        jnp.dot(out1.astype(mxu_dtype), w1_ref[...].astype(mxu_dtype),
                preferred_element_type=f32) + b1_ref[...], 0.0)
    ffn = jnp.dot(hmid.astype(mxu_dtype), w2_ref[...].astype(mxu_dtype),
                  preferred_element_type=f32) + b2_ref[...]
    o_ref[...] = layer_norm(out1 + ffn, g2_ref[...], bt2_ref[...]).astype(o_ref.dtype)


def transformer_encoder_block(src, src_mask, params, num_heads,
                              *, mxu_dtype=jnp.float32):
    """Fused TransformerEncoderBlock forward. src: (B,T,D); src_mask: (B,T)."""
    b, t, d = src.shape
    a = params["w_q"].shape[1]
    head_dim = a // num_heads
    f = params["w_ffn1"].shape[1]
    inv_scale = 1.0 / (float(head_dim) ** 0.5)               # fold scale into Q projection

    kernel = functools.partial(
        _encoder_block_kernel,
        heads=num_heads, head_dim=head_dim, eps=1e-6, mxu_dtype=mxu_dtype)

    def resident(shape):
        # full-extent block, same block index every grid step -> stays resident in VMEM
        return pl.BlockSpec(shape, lambda i: (0,) * len(shape))

    out = pl.pallas_call(
        kernel,
        grid=(b,),
        in_specs=[
            pl.BlockSpec((None, t, d), lambda i: (i, 0, 0)),   # x: one batch per grid step
            resident((b, t)),                                  # mask (row sliced in-kernel)
            resident((d, a)), resident((1, a)),                # w_q, b_q (pre-scaled)
            resident((d, 2 * a)), resident((1, 2 * a)),        # w_kv, b_kv
            resident((a, d)), resident((1, d)),                # w_out, b_out
            resident((d, f)), resident((1, f)),                # w_ffn1, b_ffn1
            resident((f, d)), resident((1, d)),                # w_ffn2, b_ffn2
            resident((1, d)), resident((1, d)),                # g1, bt1
            resident((1, d)), resident((1, d)),                # g2, bt2
        ],
        out_specs=pl.BlockSpec((None, t, d), lambda i: (i, 0, 0)),
        out_shape=jax.ShapeDtypeStruct((b, t, d), jnp.float32),
        scratch_shapes=[pltpu.VMEM((t, a), jnp.float32)],      # per-head ctx buffer (T, A)
        compiler_params=pltpu.CompilerParams(
            dimension_semantics=("parallel",)),                # shard batch across TCs (v7x)
    )(
        src,
        src_mask.astype(jnp.float32),
        params["w_q"] * inv_scale, (params["b_q"] * inv_scale).reshape(1, a),
        params["w_kv"], params["b_kv"].reshape(1, 2 * a),
        params["w_out"], params["b_out"].reshape(1, d),
        params["w_ffn1"], params["b_ffn1"].reshape(1, f),
        params["w_ffn2"], params["b_ffn2"].reshape(1, d),
        params["g1"].reshape(1, d), params["bt1"].reshape(1, d),
        params["g2"].reshape(1, d), params["bt2"].reshape(1, d),
    )
    return out


# --------------------------- pure-JAX reference ----------------------------

def _ref_forward(src, src_mask, p, num_heads):
    b, t, d = src.shape
    a = p["w_q"].shape[1]
    head = a // num_heads
    scale = float(head) ** 0.5

    q = src @ p["w_q"] + p["b_q"]
    kv = src @ p["w_kv"] + p["b_kv"]
    k, v = kv[..., :a], kv[..., a:]

    def to_heads(x):
        return (x.reshape(b, t, num_heads, head).transpose(0, 2, 1, 3)
                 .reshape(b * num_heads, t, head))

    qh, kh, vh = to_heads(q), to_heads(k), to_heads(v)
    scores = jnp.einsum("bqd,bkd->bqk", qh / scale, kh)
    m = jnp.repeat(src_mask, num_heads, axis=0)[:, None, :]
    scores = jnp.where(m > 0, scores, -1e32)
    attn = jax.nn.softmax(scores, axis=-1)
    out = jnp.einsum("bqk,bkd->bqd", attn, vh)
    out = (out.reshape(b, num_heads, t, head).transpose(0, 2, 1, 3)
              .reshape(b, t, a))
    attn_out = out @ p["w_out"] + p["b_out"]

    def ln(x, g, beta, eps=1e-6):
        mean = jnp.mean(x, axis=-1, keepdims=True)
        std = jnp.sqrt(jnp.mean(jnp.square(x - mean), axis=-1, keepdims=True))
        return g * (x - mean) / (std + eps) + beta

    out1 = ln(src + attn_out, p["g1"], p["bt1"])
    h = jax.nn.relu(out1 @ p["w_ffn1"] + p["b_ffn1"])
    ffn = h @ p["w_ffn2"] + p["b_ffn2"]
    return ln(out1 + ffn, p["g2"], p["bt2"])


# --------------------------------- main ------------------------------------

if __name__ == "__main__":
    B, T = 2, 8
    MODEL_DIM, ATTN_DIM, NUM_HEADS, FF_DIM = 32, 32, 4, 64

    key = jax.random.PRNGKey(0)
    keys = jax.random.split(key, 10)

    def init(k, shape, scl=0.1):
        return scl * jax.random.normal(k, shape, dtype=jnp.float32)

    params = {
        "w_q":    init(keys[0], (MODEL_DIM, ATTN_DIM)),
        "b_q":    init(keys[1], (ATTN_DIM,), 0.02),
        "w_kv":   init(keys[2], (MODEL_DIM, 2 * ATTN_DIM)),
        "b_kv":   init(keys[3], (2 * ATTN_DIM,), 0.02),
        "w_out":  init(keys[4], (ATTN_DIM, MODEL_DIM)),
        "b_out":  init(keys[5], (MODEL_DIM,), 0.02),
        "w_ffn1": init(keys[6], (MODEL_DIM, FF_DIM)),
        "b_ffn1": init(keys[7], (FF_DIM,), 0.02),
        "w_ffn2": init(keys[8], (FF_DIM, MODEL_DIM)),
        "b_ffn2": init(keys[9], (MODEL_DIM,), 0.02),
        "g1":  jnp.ones((MODEL_DIM,), jnp.float32),
        "bt1": jnp.zeros((MODEL_DIM,), jnp.float32),
        "g2":  jnp.ones((MODEL_DIM,), jnp.float32),
        "bt2": jnp.zeros((MODEL_DIM,), jnp.float32),
    }

    src = jax.random.normal(jax.random.PRNGKey(1), (B, T, MODEL_DIM), dtype=jnp.float32)
    src_mask = (jnp.ones((B, T), jnp.float32)
                .at[1, -2:].set(0.0)
                .at[0, -1].set(0.0))

    # TODO(synk): dropout layers (attention / attn / FFN) are eval-mode identity here;
    # training-mode stochastic dropout is not implemented in the kernel.
    out = transformer_encoder_block(src, src_mask, params, NUM_HEADS)
    jax.block_until_ready(out)

    ref = _ref_forward(src, src_mask, params, NUM_HEADS)
    assert out.shape == (B, T, MODEL_DIM)
    err = float(jnp.max(jnp.abs(out - ref)))
    assert jnp.allclose(out, ref, rtol=2e-3, atol=2e-3), f"max abs err {err}"

    print("KERNEL_OK")
</pallas_src>

<mosaic_0001>
module attributes {stable_mosaic.version = 11 : i64} {
  func.func @_encoder_block_kernel(%arg0: i32, %arg1: memref<1x8x32xf32, #tpu.memory_space<vmem>>, %arg2: memref<2x8xf32, #tpu.memory_space<vmem>>, %arg3: memref<32x32xf32, #tpu.memory_space<vmem>>, %arg4: memref<1x32xf32, #tpu.memory_space<vmem>>, %arg5: memref<32x64xf32, #tpu.memory_space<vmem>>, %arg6: memref<1x64xf32, #tpu.memory_space<vmem>>, %arg7: memref<32x32xf32, #tpu.memory_space<vmem>>, %arg8: memref<1x32xf32, #tpu.memory_space<vmem>>, %arg9: memref<32x64xf32, #tpu.memory_space<vmem>>, %arg10: memref<1x64xf32, #tpu.memory_space<vmem>>, %arg11: memref<64x32xf32, #tpu.memory_space<vmem>>, %arg12: memref<1x32xf32, #tpu.memory_space<vmem>>, %arg13: memref<1x32xf32, #tpu.memory_space<vmem>>, %arg14: memref<1x32xf32, #tpu.memory_space<vmem>>, %arg15: memref<1x32xf32, #tpu.memory_space<vmem>>, %arg16: memref<1x32xf32, #tpu.memory_space<vmem>>, %arg17: memref<1x8x32xf32, #tpu.memory_space<vmem>>, %arg18: memref<8x32xf32, #tpu.memory_space<vmem>>) attributes {dimension_semantics = [#tpu.dimension_semantics<parallel>], iteration_bounds = array<i64: 2>, scalar_prefetch = 0 : i64, scratch_operands = 1 : i64, tpu.core_type = #tpu.core_type<tc>, window_params = [{transform_indices = @transform_0, window_bounds = array<i64: 1, 8, 32>}, {pipeline_mode = #tpu.pipeline_mode<synchronous>, transform_indices = @transform_1, window_bounds = array<i64: 2, 8>}, {pipeline_mode = #tpu.pipeline_mode<synchronous>, transform_indices = @transform_2, window_bounds = array<i64: 32, 32>}, {pipeline_mode = #tpu.pipeline_mode<synchronous>, transform_indices = @transform_3, window_bounds = array<i64: 1, 32>}, {pipeline_mode = #tpu.pipeline_mode<synchronous>, transform_indices = @transform_4, window_bounds = array<i64: 32, 64>}, {pipeline_mode = #tpu.pipeline_mode<synchronous>, transform_indices = @transform_5, window_bounds = array<i64: 1, 64>}, {pipeline_mode = #tpu.pipeline_mode<synchronous>, transform_indices = @transform_6, window_bounds = array<i64: 32, 32>}, {pipeline_mode = #tpu.pipeline_mode<synchronous>, transform_indices = @transform_7, window_bounds = array<i64: 1, 32>}, {pipeline_mode = #tpu.pipeline_mode<synchronous>, transform_indices = @transform_8, window_bounds = array<i64: 32, 64>}, {pipeline_mode = #tpu.pipeline_mode<synchronous>, transform_indices = @transform_9, window_bounds = array<i64: 1, 64>}, {pipeline_mode = #tpu.pipeline_mode<synchronous>, transform_indices = @transform_10, window_bounds = array<i64: 64, 32>}, {pipeline_mode = #tpu.pipeline_mode<synchronous>, transform_indices = @transform_11, window_bounds = array<i64: 1, 32>}, {pipeline_mode = #tpu.pipeline_mode<synchronous>, transform_indices = @transform_12, window_bounds = array<i64: 1, 32>}, {pipeline_mode = #tpu.pipeline_mode<synchronous>, transform_indices = @transform_13, window_bounds = array<i64: 1, 32>}, {pipeline_mode = #tpu.pipeline_mode<synchronous>, transform_indices = @transform_14, window_bounds = array<i64: 1, 32>}, {pipeline_mode = #tpu.pipeline_mode<synchronous>, transform_indices = @transform_15, window_bounds = array<i64: 1, 32>}, {transform_indices = @transform_16, window_bounds = array<i64: 1, 8, 32>}]} {
    %c0 = arith.constant 0 : index
    %c0_0 = arith.constant 0 : index
    %c0_1 = arith.constant 0 : index
    %0 = vector.load %arg1[%c0, %c0_0, %c0_1] : memref<1x8x32xf32, #tpu.memory_space<vmem>>, vector<1x8x32xf32>
    %1 = vector.shape_cast %0 : vector<1x8x32xf32> to vector<8x32xf32>
    %2 = arith.index_cast %arg0 : i32 to index
    %c0_2 = arith.constant 0 : index
    %3 = vector.load %arg2[%2, %c0_2] : memref<2x8xf32, #tpu.memory_space<vmem>>, vector<1x8xf32>
    %cst = arith.constant 0.000000e+00 : f32
    %4 = vector.broadcast %cst : f32 to vector<1x8xf32>
    %5 = arith.cmpf ogt, %3, %4 : vector<1x8xf32>
    %6 = vector.shape_cast %5 : vector<1x8xi1> to vector<1x8xi1>
    %7 = vector.broadcast %6 : vector<1x8xi1> to vector<8x8xi1>
    %c0_3 = arith.constant 0 : index
    %c0_4 = arith.constant 0 : index
    %8 = vector.load %arg3[%c0_3, %c0_4] : memref<32x32xf32, #tpu.memory_space<vmem>>, vector<32x32xf32>
    %cst_5 = arith.constant dense<0.000000e+00> : vector<8x32xf32>
    %9 = tpu.matmul %1, %8, %cst_5 {dimension_numbers = #tpu.dot_dimension_numbers<[1], [0], [0], [1], [0, 0, 1, 1], [], []>} : vector<8x32xf32>, vector<32x32xf32>, vector<8x32xf32> -> vector<8x32xf32>
    %c0_6 = arith.constant 0 : index
    %c0_7 = arith.constant 0 : index
    %10 = vector.load %arg4[%c0_6, %c0_7] : memref<1x32xf32, #tpu.memory_space<vmem>>, vector<1x32xf32>
    %11 = vector.broadcast %10 : vector<1x32xf32> to vector<8x32xf32>
    %12 = arith.addf %9, %11 : vector<8x32xf32>
    %c0_8 = arith.constant 0 : index
    %c0_9 = arith.constant 0 : index
    %13 = vector.load %arg5[%c0_8, %c0_9] : memref<32x64xf32, #tpu.memory_space<vmem>>, vector<32x64xf32>
    %cst_10 = arith.constant dense<0.000000e+00> : vector<8x64xf32>
    %14 = tpu.matmul %1, %13, %cst_10 {dimension_numbers = #tpu.dot_dimension_numbers<[1], [0], [0], [1], [0, 0, 1, 1], [], []>} : vector<8x32xf32>, vector<32x64xf32>, vector<8x64xf32> -> vector<8x64xf32>
    %c0_11 = arith.constant 0 : index
    %c0_12 = arith.constant 0 : index
    %15 = vector.load %arg6[%c0_11, %c0_12] : memref<1x64xf32, #tpu.memory_space<vmem>>, vector<1x64xf32>
    %16 = vector.broadcast %15 : vector<1x64xf32> to vector<8x64xf32>
    %17 = arith.addf %14, %16 : vector<8x64xf32>
    %18 = vector.extract_strided_slice %17 {offsets = [0, 0], sizes = [8, 32], strides = [1, 1]} : vector<8x64xf32> to vector<8x32xf32>
    %19 = vector.extract_strided_slice %17 {offsets = [0, 32], sizes = [8, 32], strides = [1, 1]} : vector<8x64xf32> to vector<8x32xf32>
    %20 = vector.extract_strided_slice %12 {offsets = [0, 0], sizes = [8, 8], strides = [1, 1]} : vector<8x32xf32> to vector<8x8xf32>
    %21 = vector.extract_strided_slice %18 {offsets = [0, 0], sizes = [8, 8], strides = [1, 1]} : vector<8x32xf32> to vector<8x8xf32>
    %22 = vector.extract_strided_slice %19 {offsets = [0, 0], sizes = [8, 8], strides = [1, 1]} : vector<8x32xf32> to vector<8x8xf32>
    %cst_13 = arith.constant dense<0.000000e+00> : vector<8x8xf32>
    %23 = tpu.matmul %20, %21, %cst_13 {dimension_numbers = #tpu.dot_dimension_numbers<[1], [1], [0], [0], [0, 0, 1, 0], [], []>} : vector<8x8xf32>, vector<8x8xf32>, vector<8x8xf32> -> vector<8x8xf32>
    %cst_14 = arith.constant -1.000000e+32 : f32
    %24 = vector.broadcast %cst_14 : f32 to vector<8x8xf32>
    %25 = arith.select %7, %23, %24 : vector<8x8xi1>, vector<8x8xf32>
    %cst_15 = arith.constant dense<0xFF800000> : vector<8xf32>
    %26 = vector.multi_reduction <maximumf>, %25, %cst_15 [1] : vector<8x8xf32> to vector<8xf32>
    %27 = vector.shape_cast %26 : vector<8xf32> to vector<8x1xf32>
    %28 = vector.broadcast %27 : vector<8x1xf32> to vector<8x8xf32>
    %29 = arith.subf %25, %28 : vector<8x8xf32>
    %30 = math.exp %29 : vector<8x8xf32>
    %cst_16 = arith.constant dense<0.000000e+00> : vector<8xf32>
    %31 = vector.multi_reduction <add>, %30, %cst_16 [1] : vector<8x8xf32> to vector<8xf32>
    %32 = vector.shape_cast %31 : vector<8xf32> to vector<8x1xf32>
    %33 = tpu.reciprocal %32 : vector<8x1xf32> -> vector<8x1xf32>
    %34 = vector.broadcast %33 : vector<8x1xf32> to vector<8x8xf32>
    %35 = arith.mulf %30, %34 : vector<8x8xf32>
    %cst_17 = arith.constant dense<0.000000e+00> : vector<8x8xf32>
    %36 = tpu.matmul %35, %22, %cst_17 {dimension_numbers = #tpu.dot_dimension_numbers<[1], [0], [0], [1], [0, 0, 1, 1], [], []>} : vector<8x8xf32>, vector<8x8xf32>, vector<8x8xf32> -> vector<8x8xf32>
    %c0_18 = arith.constant 0 : index
    %c0_19 = arith.constant 0 : index
    %37 = vector.load %arg18[%c0_18, %c0_19] : memref<8x32xf32, #tpu.memory_space<vmem>>, vector<8x8xf32>
    tpu.vector_store %arg18[%c0_18, %c0_19], %36 {strides = array<i32>} : memref<8x32xf32, #tpu.memory_space<vmem>>, vector<8x8xf32>,
    %38 = vector.extract_strided_slice %12 {offsets = [0, 8], sizes = [8, 8], strides = [1, 1]} : vector<8x32xf32> to vector<8x8xf32>
    %39 = vector.extract_strided_slice %18 {offsets = [0, 8], sizes = [8, 8], strides = [1, 1]} : vector<8x32xf32> to vector<8x8xf32>
    %40 = vector.extract_strided_slice %19 {offsets = [0, 8], sizes = [8, 8], strides = [1, 1]} : vector<8x32xf32> to vector<8x8xf32>
    %cst_20 = arith.constant dense<0.000000e+00> : vector<8x8xf32>
    %41 = tpu.matmul %38, %39, %cst_20 {dimension_numbers = #tpu.dot_dimension_numbers<[1], [1], [0], [0], [0, 0, 1, 0], [], []>} : vector<8x8xf32>, vector<8x8xf32>, vector<8x8xf32> -> vector<8x8xf32>
    %cst_21 = arith.constant -1.000000e+32 : f32
    %42 = vector.broadcast %cst_21 : f32 to vector<8x8xf32>
    %43 = arith.select %7, %41, %42 : vector<8x8xi1>, vector<8x8xf32>
    %cst_22 = arith.constant dense<0xFF800000> : vector<8xf32>
    %44 = vector.multi_reduction <maximumf>, %43, %cst_22 [1] : vector<8x8xf32> to vector<8xf32>
    %45 = vector.shape_cast %44 : vector<8xf32> to vector<8x1xf32>
    %46 = vector.broadcast %45 : vector<8x1xf32> to vector<8x8xf32>
    %47 = arith.subf %43, %46 : vector<8x8xf32>
    %48 = math.exp %47 : vector<8x8xf32>
    %cst_23 = arith.constant dense<0.000000e+00> : vector<8xf32>
    %49 = vector.multi_reduction <add>, %48, %cst_23 [1] : vector<8x8xf32> to vector<8xf32>
    %50 = vector.shape_cast %49 : vector<8xf32> to vector<8x1xf32>
    %51 = tpu.reciprocal %50 : vector<8x1xf32> -> vector<8x1xf32>
    %52 = vector.broadcast %51 : vector<8x1xf32> to vector<8x8xf32>
    %53 = arith.mulf %48, %52 : vector<8x8xf32>
    %cst_24 = arith.constant dense<0.000000e+00> : vector<8x8xf32>
    %54 = tpu.matmul %53, %40, %cst_24 {dimension_numbers = #tpu.dot_dimension_numbers<[1], [0], [0], [1], [0, 0, 1, 1], [], []>} : vector<8x8xf32>, vector<8x8xf32>, vector<8x8xf32> -> vector<8x8xf32>
    %c0_25 = arith.constant 0 : index
    %c8 = arith.constant 8 : index
    %55 = vector.load %arg18[%c0_25, %c8] : memref<8x32xf32, #tpu.memory_space<vmem>>, vector<8x8xf32>
    tpu.vector_store %arg18[%c0_25, %c8], %54 {strides = array<i32>} : memref<8x32xf32, #tpu.memory_space<vmem>>, vector<8x8xf32>,
    %56 = vector.extract_strided_slice %12 {offsets = [0, 16], sizes = [8, 8], strides = [1, 1]} : vector<8x32xf32> to vector<8x8xf32>
    %57 = vector.extract_strided_slice %18 {offsets = [0, 16], sizes = [8, 8], strides = [1, 1]} : vector<8x32xf32> to vector<8x8xf32>
    %58 = vector.extract_strided_slice %19 {offsets = [0, 16], sizes = [8, 8], strides = [1, 1]} : vector<8x32xf32> to vector<8x8xf32>
    %cst_26 = arith.constant dense<0.000000e+00> : vector<8x8xf32>
    %59 = tpu.matmul %56, %57, %cst_26 {dimension_numbers = #tpu.dot_dimension_numbers<[1], [1], [0], [0], [0, 0, 1, 0], [], []>} : vector<8x8xf32>, vector<8x8xf32>, vector<8x8xf32> -> vector<8x8xf32>
    %cst_27 = arith.constant -1.000000e+32 : f32
    %60 = vector.broadcast %cst_27 : f32 to vector<8x8xf32>
    %61 = arith.select %7, %59, %60 : vector<8x8xi1>, vector<8x8xf32>
    %cst_28 = arith.constant dense<0xFF800000> : vector<8xf32>
    %62 = vector.multi_reduction <maximumf>, %61, %cst_28 [1] : vector<8x8xf32> to vector<8xf32>
    %63 = vector.shape_cast %62 : vector<8xf32> to vector<8x1xf32>
    %64 = vector.broadcast %63 : vector<8x1xf32> to vector<8x8xf32>
    %65 = arith.subf %61, %64 : vector<8x8xf32>
    %66 = math.exp %65 : vector<8x8xf32>
    %cst_29 = arith.constant dense<0.000000e+00> : vector<8xf32>
    %67 = vector.multi_reduction <add>, %66, %cst_29 [1] : vector<8x8xf32> to vector<8xf32>
    %68 = vector.shape_cast %67 : vector<8xf32> to vector<8x1xf32>
    %69 = tpu.reciprocal %68 : vector<8x1xf32> -> vector<8x1xf32>
    %70 = vector.broadcast %69 : vector<8x1xf32> to vector<8x8xf32>
    %71 = arith.mulf %66, %70 : vector<8x8xf32>
    %cst_30 = arith.constant dense<0.000000e+00> : vector<8x8xf32>
    %72 = tpu.matmul %71, %58, %cst_30 {dimension_numbers = #tpu.dot_dimension_numbers<[1], [0], [0], [1], [0, 0, 1, 1], [], []>} : vector<8x8xf32>, vector<8x8xf32>, vector<8x8xf32> -> vector<8x8xf32>
    %c0_31 = arith.constant 0 : index
    %c16 = arith.constant 16 : index
    %73 = vector.load %arg18[%c0_31, %c16] : memref<8x32xf32, #tpu.memory_space<vmem>>, vector<8x8xf32>
    tpu.vector_store %arg18[%c0_31, %c16], %72 {strides = array<i32>} : memref<8x32xf32, #tpu.memory_space<vmem>>, vector<8x8xf32>,
    %74 = vector.extract_strided_slice %12 {offsets = [0, 24], sizes = [8, 8], strides = [1, 1]} : vector<8x32xf32> to vector<8x8xf32>
    %75 = vector.extract_strided_slice %18 {offsets = [0, 24], sizes = [8, 8], strides = [1, 1]} : vector<8x32xf32> to vector<8x8xf32>
    %76 = vector.extract_strided_slice %19 {offsets = [0, 24], sizes = [8, 8], strides = [1, 1]} : vector<8x32xf32> to vector<8x8xf32>
    %cst_32 = arith.constant dense<0.000000e+00> : vector<8x8xf32>
    %77 = tpu.matmul %74, %75, %cst_32 {dimension_numbers = #tpu.dot_dimension_numbers<[1], [1], [0], [0], [0, 0, 1, 0], [], []>} : vector<8x8xf32>, vector<8x8xf32>, vector<8x8xf32> -> vector<8x8xf32>
    %cst_33 = arith.constant -1.000000e+32 : f32
    %78 = vector.broadcast %cst_33 : f32 to vector<8x8xf32>
    %79 = arith.select %7, %77, %78 : vector<8x8xi1>, vector<8x8xf32>
    %cst_34 = arith.constant dense<0xFF800000> : vector<8xf32>
    %80 = vector.multi_reduction <maximumf>, %79, %cst_34 [1] : vector<8x8xf32> to vector<8xf32>
    %81 = vector.shape_cast %80 : vector<8xf32> to vector<8x1xf32>
    %82 = vector.broadcast %81 : vector<8x1xf32> to vector<8x8xf32>
    %83 = arith.subf %79, %82 : vector<8x8xf32>
    %84 = math.exp %83 : vector<8x8xf32>
    %cst_35 = arith.constant dense<0.000000e+00> : vector<8xf32>
    %85 = vector.multi_reduction <add>, %84, %cst_35 [1] : vector<8x8xf32> to vector<8xf32>
    %86 = vector.shape_cast %85 : vector<8xf32> to vector<8x1xf32>
    %87 = tpu.reciprocal %86 : vector<8x1xf32> -> vector<8x1xf32>
    %88 = vector.broadcast %87 : vector<8x1xf32> to vector<8x8xf32>
    %89 = arith.mulf %84, %88 : vector<8x8xf32>
    %cst_36 = arith.constant dense<0.000000e+00> : vector<8x8xf32>
    %90 = tpu.matmul %89, %76, %cst_36 {dimension_numbers = #tpu.dot_dimension_numbers<[1], [0], [0], [1], [0, 0, 1, 1], [], []>} : vector<8x8xf32>, vector<8x8xf32>, vector<8x8xf32> -> vector<8x8xf32>
    %c0_37 = arith.constant 0 : index
    %c24 = arith.constant 24 : index
    %91 = vector.load %arg18[%c0_37, %c24] : memref<8x32xf32, #tpu.memory_space<vmem>>, vector<8x8xf32>
    tpu.vector_store %arg18[%c0_37, %c24], %90 {strides = array<i32>} : memref<8x32xf32, #tpu.memory_space<vmem>>, vector<8x8xf32>,
    %c0_38 = arith.constant 0 : index
    %c0_39 = arith.constant 0 : index
    %92 = vector.load %arg18[%c0_38, %c0_39] : memref<8x32xf32, #tpu.memory_space<vmem>>, vector<8x32xf32>
    %c0_40 = arith.constant 0 : index
    %c0_41 = arith.constant 0 : index
    %93 = vector.load %arg7[%c0_40, %c0_41] : memref<32x32xf32, #tpu.memory_space<vmem>>, vector<32x32xf32>
    %cst_42 = arith.constant dense<0.000000e+00> : vector<8x32xf32>
    %94 = tpu.matmul %92, %93, %cst_42 {dimension_numbers = #tpu.dot_dimension_numbers<[1], [0], [0], [1], [0, 0, 1, 1], [], []>} : vector<8x32xf32>, vector<32x32xf32>, vector<8x32xf32> -> vector<8x32xf32>
    %c0_43 = arith.constant 0 : index
    %c0_44 = arith.constant 0 : index
    %95 = vector.load %arg8[%c0_43, %c0_44] : memref<1x32xf32, #tpu.memory_space<vmem>>, vector<1x32xf32>
    %96 = vector.broadcast %95 : vector<1x32xf32> to vector<8x32xf32>
    %97 = arith.addf %94, %96 : vector<8x32xf32>
    %98 = arith.addf %1, %97 : vector<8x32xf32>
    %c0_45 = arith.constant 0 : index
    %c0_46 = arith.constant 0 : index
    %99 = vector.load %arg13[%c0_45, %c0_46] : memref<1x32xf32, #tpu.memory_space<vmem>>, vector<1x32xf32>
    %c0_47 = arith.constant 0 : index
    %c0_48 = arith.constant 0 : index
    %100 = vector.load %arg14[%c0_47, %c0_48] : memref<1x32xf32, #tpu.memory_space<vmem>>, vector<1x32xf32>
    %cst_49 = arith.constant dense<0.000000e+00> : vector<8xf32>
    %101 = vector.multi_reduction <add>, %98, %cst_49 [1] : vector<8x32xf32> to vector<8xf32>
    %102 = vector.shape_cast %101 : vector<8xf32> to vector<8x1xf32>
    %cst_50 = arith.constant 3.200000e+01 : f32
    %103 = vector.broadcast %cst_50 : f32 to vector<8x1xf32>
    %104 = arith.divf %102, %103 : vector<8x1xf32>
    %105 = vector.broadcast %104 : vector<8x1xf32> to vector<8x32xf32>
    %106 = arith.subf %98, %105 : vector<8x32xf32>
    %107 = arith.mulf %106, %106 : vector<8x32xf32>
    %cst_51 = arith.constant dense<0.000000e+00> : vector<8xf32>
    %108 = vector.multi_reduction <add>, %107, %cst_51 [1] : vector<8x32xf32> to vector<8xf32>
    %109 = vector.shape_cast %108 : vector<8xf32> to vector<8x1xf32>
    %cst_52 = arith.constant 3.200000e+01 : f32
    %110 = vector.broadcast %cst_52 : f32 to vector<8x1xf32>
    %111 = arith.divf %109, %110 : vector<8x1xf32>
    %112 = math.sqrt %111 : vector<8x1xf32>
    %cst_53 = arith.constant 9.99999997E-7 : f32
    %113 = vector.broadcast %cst_53 : f32 to vector<8x1xf32>
    %114 = arith.addf %112, %113 : vector<8x1xf32>
    %115 = tpu.reciprocal %114 : vector<8x1xf32> -> vector<8x1xf32>
    %116 = vector.broadcast %104 : vector<8x1xf32> to vector<8x32xf32>
    %117 = arith.subf %98, %116 : vector<8x32xf32>
    %118 = vector.broadcast %99 : vector<1x32xf32> to vector<8x32xf32>
    %119 = arith.mulf %118, %117 : vector<8x32xf32>
    %120 = vector.broadcast %115 : vector<8x1xf32> to vector<8x32xf32>
    %121 = arith.mulf %119, %120 : vector<8x32xf32>
    %122 = vector.broadcast %100 : vector<1x32xf32> to vector<8x32xf32>
    %123 = arith.addf %121, %122 : vector<8x32xf32>
    %c0_54 = arith.constant 0 : index
    %c0_55 = arith.constant 0 : index
    %124 = vector.load %arg9[%c0_54, %c0_55] : memref<32x64xf32, #tpu.memory_space<vmem>>, vector<32x64xf32>
    %cst_56 = arith.constant dense<0.000000e+00> : vector<8x64xf32>
    %125 = tpu.matmul %123, %124, %cst_56 {dimension_numbers = #tpu.dot_dimension_numbers<[1], [0], [0], [1], [0, 0, 1, 1], [], []>} : vector<8x32xf32>, vector<32x64xf32>, vector<8x64xf32> -> vector<8x64xf32>
    %c0_57 = arith.constant 0 : index
    %c0_58 = arith.constant 0 : index
    %126 = vector.load %arg10[%c0_57, %c0_58] : memref<1x64xf32, #tpu.memory_space<vmem>>, vector<1x64xf32>
    %127 = vector.broadcast %126 : vector<1x64xf32> to vector<8x64xf32>
    %128 = arith.addf %125, %127 : vector<8x64xf32>
    %cst_59 = arith.constant 0.000000e+00 : f32
    %129 = vector.broadcast %cst_59 : f32 to vector<8x64xf32>
    %130 = arith.maximumf %128, %129 : vector<8x64xf32>
    %c0_60 = arith.constant 0 : index
    %c0_61 = arith.constant 0 : index
    %131 = vector.load %arg11[%c0_60, %c0_61] : memref<64x32xf32, #tpu.memory_space<vmem>>, vector<64x32xf32>
    %cst_62 = arith.constant dense<0.000000e+00> : vector<8x32xf32>
    %132 = tpu.matmul %130, %131, %cst_62 {dimension_numbers = #tpu.dot_dimension_numbers<[1], [0], [0], [1], [0, 0, 1, 1], [], []>} : vector<8x64xf32>, vector<64x32xf32>, vector<8x32xf32> -> vector<8x32xf32>
    %c0_63 = arith.constant 0 : index
    %c0_64 = arith.constant 0 : index
    %133 = vector.load %arg12[%c0_63, %c0_64] : memref<1x32xf32, #tpu.memory_space<vmem>>, vector<1x32xf32>
    %134 = vector.broadcast %133 : vector<1x32xf32> to vector<8x32xf32>
    %135 = arith.addf %132, %134 : vector<8x32xf32>
    %136 = arith.addf %123, %135 : vector<8x32xf32>
    %c0_65 = arith.constant 0 : index
    %c0_66 = arith.constant 0 : index
    %137 = vector.load %arg15[%c0_65, %c0_66] : memref<1x32xf32, #tpu.memory_space<vmem>>, vector<1x32xf32>
    %c0_67 = arith.constant 0 : index
    %c0_68 = arith.constant 0 : index
    %138 = vector.load %arg16[%c0_67, %c0_68] : memref<1x32xf32, #tpu.memory_space<vmem>>, vector<1x32xf32>
    %cst_69 = arith.constant dense<0.000000e+00> : vector<8xf32>
    %139 = vector.multi_reduction <add>, %136, %cst_69 [1] : vector<8x32xf32> to vector<8xf32>
    %140 = vector.shape_cast %139 : vector<8xf32> to vector<8x1xf32>
    %cst_70 = arith.constant 3.200000e+01 : f32
    %141 = vector.broadcast %cst_70 : f32 to vector<8x1xf32>
    %142 = arith.divf %140, %141 : vector<8x1xf32>
    %143 = vector.broadcast %142 : vector<8x1xf32> to vector<8x32xf32>
    %144 = arith.subf %136, %143 : vector<8x32xf32>
    %145 = arith.mulf %144, %144 : vector<8x32xf32>
    %cst_71 = arith.constant dense<0.000000e+00> : vector<8xf32>
    %146 = vector.multi_reduction <add>, %145, %cst_71 [1] : vector<8x32xf32> to vector<8xf32>
    %147 = vector.shape_cast %146 : vector<8xf32> to vector<8x1xf32>
    %cst_72 = arith.constant 3.200000e+01 : f32
    %148 = vector.broadcast %cst_72 : f32 to vector<8x1xf32>
    %149 = arith.divf %147, %148 : vector<8x1xf32>
    %150 = math.sqrt %149 : vector<8x1xf32>
    %cst_73 = arith.constant 9.99999997E-7 : f32
    %151 = vector.broadcast %cst_73 : f32 to vector<8x1xf32>
    %152 = arith.addf %150, %151 : vector<8x1xf32>
    %153 = tpu.reciprocal %152 : vector<8x1xf32> -> vector<8x1xf32>
    %154 = vector.broadcast %142 : vector<8x1xf32> to vector<8x32xf32>
    %155 = arith.subf %136, %154 : vector<8x32xf32>
    %156 = vector.broadcast %137 : vector<1x32xf32> to vector<8x32xf32>
    %157 = arith.mulf %156, %155 : vector<8x32xf32>
    %158 = vector.broadcast %153 : vector<8x1xf32> to vector<8x32xf32>
    %159 = arith.mulf %157, %158 : vector<8x32xf32>
    %160 = vector.broadcast %138 : vector<1x32xf32> to vector<8x32xf32>
    %161 = arith.addf %159, %160 : vector<8x32xf32>
    %c0_74 = arith.constant 0 : index
    %c0_75 = arith.constant 0 : index
    %c0_76 = arith.constant 0 : index
    %162 = vector.load %arg17[%c0_74, %c0_75, %c0_76] : memref<1x8x32xf32, #tpu.memory_space<vmem>>, vector<1x8x32xf32>
    %163 = vector.shape_cast %162 : vector<1x8x32xf32> to vector<8x32xf32>
    %164 = vector.shape_cast %161 : vector<8x32xf32> to vector<1x8x32xf32>
    tpu.vector_store %arg17[%c0_74, %c0_75, %c0_76], %164 {strides = array<i32>} : memref<1x8x32xf32, #tpu.memory_space<vmem>>, vector<1x8x32xf32>,
    return
  }
  func.func @transform_0(%arg0: i32) -> (i32, i32, i32) {
    %c0_i32 = arith.constant 0 : i32
    %c0_i32_0 = arith.constant 0 : i32
    %c0_i32_1 = arith.constant 0 : i32
    return %arg0, %c0_i32, %c0_i32_0 : i32, i32, i32
  }
  func.func @transform_1(%arg0: i32) -> (i32, i32) {
    %c0_i32 = arith.constant 0 : i32
    %c0_i32_0 = arith.constant 0 : i32
    %c0_i32_1 = arith.constant 0 : i32
    return %c0_i32, %c0_i32_0 : i32, i32
  }
  func.func @transform_2(%arg0: i32) -> (i32, i32) {
    %c0_i32 = arith.constant 0 : i32
    %c0_i32_0 = arith.constant 0 : i32
    %c0_i32_1 = arith.constant 0 : i32
    return %c0_i32, %c0_i32_0 : i32, i32
  }
  func.func @transform_3(%arg0: i32) -> (i32, i32) {
    %c0_i32 = arith.constant 0 : i32
    %c0_i32_0 = arith.constant 0 : i32
    %c0_i32_1 = arith.constant 0 : i32
    return %c0_i32, %c0_i32_0 : i32, i32
  }
  func.func @transform_4(%arg0: i32) -> (i32, i32) {
    %c0_i32 = arith.constant 0 : i32
    %c0_i32_0 = arith.constant 0 : i32
    %c0_i32_1 = arith.constant 0 : i32
    return %c0_i32, %c0_i32_0 : i32, i32
  }
  func.func @transform_5(%arg0: i32) -> (i32, i32) {
    %c0_i32 = arith.constant 0 : i32
    %c0_i32_0 = arith.constant 0 : i32
    %c0_i32_1 = arith.constant 0 : i32
    return %c0_i32, %c0_i32_0 : i32, i32
  }
  func.func @transform_6(%arg0: i32) -> (i32, i32) {
    %c0_i32 = arith.constant 0 : i32
    %c0_i32_0 = arith.constant 0 : i32
    %c0_i32_1 = arith.constant 0 : i32
    return %c0_i32, %c0_i32_0 : i32, i32
  }
  func.func @transform_7(%arg0: i32) -> (i32, i32) {
    %c0_i32 = arith.constant 0 : i32
    %c0_i32_0 = arith.constant 0 : i32
    %c0_i32_1 = arith.constant 0 : i32
    return %c0_i32, %c0_i32_0 : i32, i32
  }
  func.func @transform_8(%arg0: i32) -> (i32, i32) {
    %c0_i32 = arith.constant 0 : i32
    %c0_i32_0 = arith.constant 0 : i32
    %c0_i32_1 = arith.constant 0 : i32
    return %c0_i32, %c0_i32_0 : i32, i32
  }
  func.func @transform_9(%arg0: i32) -> (i32, i32) {
    %c0_i32 = arith.constant 0 : i32
    %c0_i32_0 = arith.constant 0 : i32
    %c0_i32_1 = arith.constant 0 : i32
    return %c0_i32, %c0_i32_0 : i32, i32
  }
  func.func @transform_10(%arg0: i32) -> (i32, i32) {
    %c0_i32 = arith.constant 0 : i32
    %c0_i32_0 = arith.constant 0 : i32
    %c0_i32_1 = arith.constant 0 : i32
    return %c0_i32, %c0_i32_0 : i32, i32
  }
  func.func @transform_11(%arg0: i32) -> (i32, i32) {
    %c0_i32 = arith.constant 0 : i32
    %c0_i32_0 = arith.constant 0 : i32
    %c0_i32_1 = arith.constant 0 : i32
    return %c0_i32, %c0_i32_0 : i32, i32
  }
  func.func @transform_12(%arg0: i32) -> (i32, i32) {
    %c0_i32 = arith.constant 0 : i32
    %c0_i32_0 = arith.constant 0 : i32
    %c0_i32_1 = arith.constant 0 : i32
    return %c0_i32, %c0_i32_0 : i32, i32
  }
  func.func @transform_13(%arg0: i32) -> (i32, i32) {
    %c0_i32 = arith.constant 0 : i32
    %c0_i32_0 = arith.constant 0 : i32
    %c0_i32_1 = arith.constant 0 : i32
    return %c0_i32, %c0_i32_0 : i32, i32
  }
  func.func @transform_14(%arg0: i32) -> (i32, i32) {
    %c0_i32 = arith.constant 0 : i32
    %c0_i32_0 = arith.constant 0 : i32
    %c0_i32_1 = arith.constant 0 : i32
    return %c0_i32, %c0_i32_0 : i32, i32
  }
  func.func @transform_15(%arg0: i32) -> (i32, i32) {
    %c0_i32 = arith.constant 0 : i32
    %c0_i32_0 = arith.constant 0 : i32
    %c0_i32_1 = arith.constant 0 : i32
    return %c0_i32, %c0_i32_0 : i32, i32
  }
  func.func @transform_16(%arg0: i32) -> (i32, i32, i32) {
    %c0_i32 = arith.constant 0 : i32
    %c0_i32_0 = arith.constant 0 : i32
    %c0_i32_1 = arith.constant 0 : i32
    return %arg0, %c0_i32, %c0_i32_0 : i32, i32, i32
  }
}

</mosaic_0001>

<llo_original>
// kernel: tpu_custom_call.1
$region0: #{tpu_custom_call.1}
  #allocation0 [shape = 'u32[]', space=smem, size = 0x4, offset = 0x4, fixed_abs, tag = 'smem constant byte address 0x4 - core index']
  #allocation1 [shape = 'u32[72,128]{1,0:T(1,128)}', space=vmem, size = 0x9000, scoped, tag = 'internal scratch']
  #allocation2 [shape = 'f32[8,32]{1,0:T(8,128)}', space=vmem, size = 0x1000, scoped, tag = 'scratch operand']
  %s0 = inlined_call_operand.hbm [shape: f32[2,8,32], index: 0, kind: input, shape index: {}]
  %s1 = inlined_call_operand.hbm [shape: f32[2,8], index: 1, kind: input, shape index: {}]
  %s2 = inlined_call_operand.vmem [shape: f32[32,32], index: 2, kind: input, shape index: {}]
  %s3 = inlined_call_operand.vmem [shape: f32[1,32], index: 3, kind: input, shape index: {}]
  %s4 = inlined_call_operand.vmem [shape: f32[32,64], index: 4, kind: input, shape index: {}]
  %s5 = inlined_call_operand.vmem [shape: f32[1,64], index: 5, kind: input, shape index: {}]
  %s6 = inlined_call_operand.vmem [shape: f32[32,32], index: 6, kind: input, shape index: {}]
  %s7 = inlined_call_operand.vmem [shape: f32[1,32], index: 7, kind: input, shape index: {}]
  %s8 = inlined_call_operand.hbm [shape: f32[32,64], index: 8, kind: input, shape index: {}]
  %s9 = inlined_call_operand.vmem [shape: f32[1,64], index: 9, kind: input, shape index: {}]
  %s10 = inlined_call_operand.vmem [shape: f32[64,32], index: 10, kind: input, shape index: {}]
  %s11 = inlined_call_operand.vmem [shape: f32[1,32], index: 11, kind: input, shape index: {}]
  %s12 = inlined_call_operand.vmem [shape: f32[1,32], index: 12, kind: input, shape index: {}]
  %s13 = inlined_call_operand.vmem [shape: f32[1,32], index: 13, kind: input, shape index: {}]
  %s14 = inlined_call_operand.vmem [shape: f32[1,32], index: 14, kind: input, shape index: {}]
  %s15 = inlined_call_operand.vmem [shape: f32[1,32], index: 15, kind: input, shape index: {}]
  %s16 = inlined_call_operand.hbm [shape: f32[2,8,32], index: 16, kind: output, shape index: {}]
  %s17 = sld [smem:[#allocation0]]
  $region109: #{tpu_custom_call.1} parent=0
    _
  %s19 = ssub.s32 1, %s17
  %s20 = scalar_select 0, %s19, %s17
  $region1: #{tpu_custom_call.1} parent=0
    #allocation3 [shape = 'u8[8192]{0}', space=vmem, size = 0x2000, scoped, tag = 'input window, operand 0']
    #allocation4 [shape = 's32[2]{0}', space=sflag, size = 0x8, scoped, tag = 'scoped memory for tpu_custom_call.1']
    #allocation5 [shape = 's32[2]{0}', space=sflag, size = 0x8, scoped, tag = 'scoped memory for tpu_custom_call.1']
    #allocation6 [shape = 'u8[1024]{0}', space=vmem, size = 0x400, scoped, tag = 'input window, operand 1, single buffered']
    #allocation7 [shape = 's32[1]{0}', space=sflag, size = 0x4, scoped, tag = 'scoped memory for tpu_custom_call.1']
    #allocation8 [shape = 'u8[16384]{0}', space=vmem, size = 0x4000, scoped, tag = 'input window, operand 8, single buffered']
    #allocation9 [shape = 'u8[8192]{0}', space=vmem, size = 0x2000, scoped, tag = 'output window, operand 0']
    %21 = vsyncpa [#allocation4], 0
    %s22 = scalar_lea.sflag [#allocation4], 1
    %23 = vsyncpa %s22, 0
    %24 = vsyncpa [#allocation7], 0
    %25 = vsyncpa [#allocation5], 0
    %s26 = scalar_lea.sflag [#allocation5], 1
    %27 = vsyncpa %s26, 0
    loop: start=0, step=1, limit=4
    $region2: #{tpu_custom_call.1} parent=1 // loop_pre_header
      _
    $region3: #{tpu_custom_call.1} parent=1 // loop_header
      %s29 = sphi 0, %s33
      %p30 = scmp.ge.s32.totalorder %s29, 4
      %s39 = sphi 0, %s41
      %s42 = sphi 0, %s39
      %s43 = sphi 0, %s42
      %s59 = sphi 0, %s43
      %s63 = sphi 0, %s63
      %s65 = sphi 0, %s63
      %s66 = sphi 0, %s65
      %s80 = sphi 0, %s66
      %s84 = sphi 0, %s84
      %s86 = sphi 0, %s84
      %s87 = sphi 0, %s86
      %s101 = sphi 0, %s87
      %s105 = sphi 0, %s105
      %s107 = sphi 0, %s105
      %s108 = sphi 0, %s107
      %s122 = sphi 0, %s108
      %s126 = sphi 0, %s126
      %s128 = sphi 0, %s126
      %s129 = sphi 0, %s128
      %s143 = sphi 0, %s129
      %s147 = sphi 0, %s147
      %s149 = sphi 0, %s147
      %s150 = sphi 0, %s149
      %s164 = sphi 0, %s150
      %s168 = sphi 0, %s168
      %s170 = sphi 0, %s168
      %s171 = sphi 0, %s170
      %s185 = sphi 0, %s171
      %s189 = sphi 0, %s189
      %s191 = sphi 0, %s189
      %s192 = sphi 0, %s191
      %s206 = sphi 0, %s192
      %s210 = sphi 0, %s210
      %s212 = sphi 0, %s210
      %s213 = sphi 0, %s212
      %s227 = sphi 0, %s213
      %s231 = sphi 0, %s231
      %s233 = sphi 0, %s231
      %s234 = sphi 0, %s233
      %s248 = sphi 0, %s234
      %s252 = sphi 0, %s252
      %s254 = sphi 0, %s252
      %s255 = sphi 0, %s254
      %s269 = sphi 0, %s255
      %s273 = sphi 0, %s273
      %s275 = sphi 0, %s273
      %s276 = sphi 0, %s275
      %s290 = sphi 0, %s276
      %s294 = sphi 0, %s294
      %s296 = sphi 0, %s294
      %s297 = sphi 0, %s296
      %s311 = sphi 0, %s297
      %s315 = sphi 0, %s315
      %s317 = sphi 0, %s315
      %s318 = sphi 0, %s317
      %s332 = sphi 0, %s318
      %s336 = sphi 0, %s336
      %s338 = sphi 0, %s336
      %s339 = sphi 0, %s338
      %s353 = sphi 0, %s339
      %s357 = sphi 0, %s357
      %s359 = sphi 0, %s357
      %s360 = sphi 0, %s359
      %s374 = sphi 0, %s360
      %s380 = sphi 0, %s382
      %s383 = sphi 0, %s380
      %s384 = sphi 0, %s383
      %s400 = sphi 0, %s384
    $region4: #{tpu_custom_call.1} parent=1 // loop_header_branch
      %32 = sbr.rel (%p30) target = $region8
    $region5: #{tpu_custom_call.1} parent=1 // loop_body
      %s34 = ssub.s32 %s29, 1
      %s35 = ssub.s32 %s29, 2
      %s36 = sadd.s32 %s29, 1
      %s37 = ssub.s32 %s29, %s36
      %p38 = scmp.eq.s32.totalorder %s37, 0
      %s40 = sadd.s32 %s39, 1
      %s41 = scalar_select %p38, %s39, %s40
      %p44 = pneg %p38
      %p45 = scmp.eq.s32.totalorder %s29, 1
      %p46 = por %p44, %p45
      %p47 = scmp.ne.s32.totalorder %s39, %s42
      %p48 = scmp.eq.s32.totalorder %s29, 0
      %p49 = por %p47, %p48
      %p50 = scmp.ne.s32.totalorder %s39, %s42
      %p51 = scmp.eq.s32.totalorder %s34, 1
      %p52 = por %p50, %p51
      %p53 = scmp.ne.s32.totalorder %s42, %s43
      %p54 = scmp.eq.s32.totalorder %s34, 0
      %p55 = por %p53, %p54
      %p56 = scmp.ne.s32.totalorder %s42, %s43
      %p57 = scmp.eq.s32.totalorder %s35, 1
      %p58 = por %p56, %p57
      %p60 = scmp.ne.s32.totalorder %s43, %s59
      %p61 = scmp.eq.s32.totalorder %s35, 0
      %p62 = por %p60, %p61
      %s64 = sadd.s32 %s63, 1
      %p67 = scmp.eq.s32.totalorder %s29, 1
      %p68 = scmp.ne.s32.totalorder %s63, %s65
      %p69 = scmp.eq.s32.totalorder %s29, 0
      %p70 = por %p68, %p69
      %p71 = scmp.ne.s32.totalorder %s63, %s65
      %p72 = scmp.eq.s32.totalorder %s34, 1
      %p73 = por %p71, %p72
      %p74 = scmp.ne.s32.totalorder %s65, %s66
      %p75 = scmp.eq.s32.totalorder %s34, 0
      %p76 = por %p74, %p75
      %p77 = scmp.ne.s32.totalorder %s65, %s66
      %p78 = scmp.eq.s32.totalorder %s35, 1
      %p79 = por %p77, %p78
      %p81 = scmp.ne.s32.totalorder %s66, %s80
      %p82 = scmp.eq.s32.totalorder %s35, 0
      %p83 = por %p81, %p82
      %s85 = sadd.s32 %s84, 1
      %p88 = scmp.eq.s32.totalorder %s29, 1
      %p89 = scmp.ne.s32.totalorder %s84, %s86
      %p90 = scmp.eq.s32.totalorder %s29, 0
      %p91 = por %p89, %p90
      %p92 = scmp.ne.s32.totalorder %s84, %s86
      %p93 = scmp.eq.s32.totalorder %s34, 1
      %p94 = por %p92, %p93
      %p95 = scmp.ne.s32.totalorder %s86, %s87
      %p96 = scmp.eq.s32.totalorder %s34, 0
      %p97 = por %p95, %p96
      %p98 = scmp.ne.s32.totalorder %s86, %s87
      %p99 = scmp.eq.s32.totalorder %s35, 1
      %p100 = por %p98, %p99
      %p102 = scmp.ne.s32.totalorder %s87, %s101
      %p103 = scmp.eq.s32.totalorder %s35, 0
      %p104 = por %p102, %p103
      %s106 = sadd.s32 %s105, 1
      %p109 = scmp.eq.s32.totalorder %s29, 1
      %p110 = scmp.ne.s32.totalorder %s105, %s107
      %p111 = scmp.eq.s32.totalorder %s29, 0
      %p112 = por %p110, %p111
      %p113 = scmp.ne.s32.totalorder %s105, %s107
      %p114 = scmp.eq.s32.totalorder %s34, 1
      %p115 = por %p113, %p114
      %p116 = scmp.ne.s32.totalorder %s107, %s108
      %p117 = scmp.eq.s32.totalorder %s34, 0
      %p118 = por %p116, %p117
      %p119 = scmp.ne.s32.totalorder %s107, %s108
      %p120 = scmp.eq.s32.totalorder %s35, 1
      %p121 = por %p119, %p120
      %p123 = scmp.ne.s32.totalorder %s108, %s122
      %p124 = scmp.eq.s32.totalorder %s35, 0
      %p125 = por %p123, %p124
      %s127 = sadd.s32 %s126, 1
      %p130 = scmp.eq.s32.totalorder %s29, 1
      %p131 = scmp.ne.s32.totalorder %s126, %s128
      %p132 = scmp.eq.s32.totalorder %s29, 0
      %p133 = por %p131, %p132
      %p134 = scmp.ne.s32.totalorder %s126, %s128
      %p135 = scmp.eq.s32.totalorder %s34, 1
      %p136 = por %p134, %p135
      %p137 = scmp.ne.s32.totalorder %s128, %s129
      %p138 = scmp.eq.s32.totalorder %s34, 0
      %p139 = por %p137, %p138
      %p140 = scmp.ne.s32.totalorder %s128, %s129
      %p141 = scmp.eq.s32.totalorder %s35, 1
      %p142 = por %p140, %p141
      %p144 = scmp.ne.s32.totalorder %s129, %s143
      %p145 = scmp.eq.s32.totalorder %s35, 0
      %p146 = por %p144, %p145
      %s148 = sadd.s32 %s147, 1
      %p151 = scmp.eq.s32.totalorder %s29, 1
      %p152 = scmp.ne.s32.totalorder %s147, %s149
      %p153 = scmp.eq.s32.totalorder %s29, 0
      %p154 = por %p152, %p153
      %p155 = scmp.ne.s32.totalorder %s147, %s149
      %p156 = scmp.eq.s32.totalorder %s34, 1
      %p157 = por %p155, %p156
      %p158 = scmp.ne.s32.totalorder %s149, %s150
      %p159 = scmp.eq.s32.totalorder %s34, 0
      %p160 = por %p158, %p159
      %p161 = scmp.ne.s32.totalorder %s149, %s150
      %p162 = scmp.eq.s32.totalorder %s35, 1
      %p163 = por %p161, %p162
      %p165 = scmp.ne.s32.totalorder %s150, %s164
      %p166 = scmp.eq.s32.totalorder %s35, 0
      %p167 = por %p165, %p166
      %s169 = sadd.s32 %s168, 1
      %p172 = scmp.eq.s32.totalorder %s29, 1
      %p173 = scmp.ne.s32.totalorder %s168, %s170
      %p174 = scmp.eq.s32.totalorder %s29, 0
      %p175 = por %p173, %p174
      %p176 = scmp.ne.s32.totalorder %s168, %s170
      %p177 = scmp.eq.s32.totalorder %s34, 1
      %p178 = por %p176, %p177
      %p179 = scmp.ne.s32.totalorder %s170, %s171
      %p180 = scmp.eq.s32.totalorder %s34, 0
      %p181 = por %p179, %p180
      %p182 = scmp.ne.s32.totalorder %s170, %s171
      %p183 = scmp.eq.s32.totalorder %s35, 1
      %p184 = por %p182, %p183
      %p186 = scmp.ne.s32.totalorder %s171, %s185
      %p187 = scmp.eq.s32.totalorder %s35, 0
      %p188 = por %p186, %p187
      %s190 = sadd.s32 %s189, 1
      %p193 = scmp.eq.s32.totalorder %s29, 1
      %p194 = scmp.ne.s32.totalorder %s189, %s191
      %p195 = scmp.eq.s32.totalorder %s29, 0
      %p196 = por %p194, %p195
      %p197 = scmp.ne.s32.totalorder %s189, %s191
      %p198 = scmp.eq.s32.totalorder %s34, 1
      %p199 = por %p197, %p198
      %p200 = scmp.ne.s32.totalorder %s191, %s192
      %p201 = scmp.eq.s32.totalorder %s34, 0
      %p202 = por %p200, %p201
      %p203 = scmp.ne.s32.totalorder %s191, %s192
      %p204 = scmp.eq.s32.totalorder %s35, 1
      %p205 = por %p203, %p204
      %p207 = scmp.ne.s32.totalorder %s192, %s206
      %p208 = scmp.eq.s32.totalorder %s35, 0
      %p209 = por %p207, %p208
      %s211 = sadd.s32 %s210, 1
      %p214 = scmp.eq.s32.totalorder %s29, 1
      %p215 = scmp.ne.s32.totalorder %s210, %s212
      %p216 = scmp.eq.s32.totalorder %s29, 0
      %p217 = por %p215, %p216
      %p218 = scmp.ne.s32.totalorder %s210, %s212
      %p219 = scmp.eq.s32.totalorder %s34, 1
      %p220 = por %p218, %p219
      %p221 = scmp.ne.s32.totalorder %s212, %s213
      %p222 = scmp.eq.s32.totalorder %s34, 0
      %p223 = por %p221, %p222
      %p224 = scmp.ne.s32.totalorder %s212, %s213
      %p225 = scmp.eq.s32.totalorder %s35, 1
      %p226 = por %p224, %p225
      %p228 = scmp.ne.s32.totalorder %s213, %s227
      %p229 = scmp.eq.s32.totalorder %s35, 0
      %p230 = por %p228, %p229
      %s232 = sadd.s32 %s231, 1
      %p235 = scmp.eq.s32.totalorder %s29, 1
      %p236 = scmp.ne.s32.totalorder %s231, %s233
      %p237 = scmp.eq.s32.totalorder %s29, 0
      %p238 = por %p236, %p237
      %p239 = scmp.ne.s32.totalorder %s231, %s233
      %p240 = scmp.eq.s32.totalorder %s34, 1
      %p241 = por %p239, %p240
      %p242 = scmp.ne.s32.totalorder %s233, %s234
      %p243 = scmp.eq.s32.totalorder %s34, 0
      %p244 = por %p242, %p243
      %p245 = scmp.ne.s32.totalorder %s233, %s234
      %p246 = scmp.eq.s32.totalorder %s35, 1
      %p247 = por %p245, %p246
      %p249 = scmp.ne.s32.totalorder %s234, %s248
      %p250 = scmp.eq.s32.totalorder %s35, 0
      %p251 = por %p249, %p250
      %s253 = sadd.s32 %s252, 1
      %p256 = scmp.eq.s32.totalorder %s29, 1
      %p257 = scmp.ne.s32.totalorder %s252, %s254
      %p258 = scmp.eq.s32.totalorder %s29, 0
      %p259 = por %p257, %p258
      %p260 = scmp.ne.s32.totalorder %s252, %s254
      %p261 = scmp.eq.s32.totalorder %s34, 1
      %p262 = por %p260, %p261
      %p263 = scmp.ne.s32.totalorder %s254, %s255
      %p264 = scmp.eq.s32.totalorder %s34, 0
      %p265 = por %p263, %p264
      %p266 = scmp.ne.s32.totalorder %s254, %s255
      %p267 = scmp.eq.s32.totalorder %s35, 1
      %p268 = por %p266, %p267
      %p270 = scmp.ne.s32.totalorder %s255, %s269
      %p271 = scmp.eq.s32.totalorder %s35, 0
      %p272 = por %p270, %p271
      %s274 = sadd.s32 %s273, 1
      %p277 = scmp.eq.s32.totalorder %s29, 1
      %p278 = scmp.ne.s32.totalorder %s273, %s275
      %p279 = scmp.eq.s32.totalorder %s29, 0
      %p280 = por %p278, %p279
      %p281 = scmp.ne.s32.totalorder %s273, %s275
      %p282 = scmp.eq.s32.totalorder %s34, 1
      %p283 = por %p281, %p282
      %p284 = scmp.ne.s32.totalorder %s275, %s276
      %p285 = scmp.eq.s32.totalorder %s34, 0
      %p286 = por %p284, %p285
      %p287 = scmp.ne.s32.totalorder %s275, %s276
      %p288 = scmp.eq.s32.totalorder %s35, 1
      %p289 = por %p287, %p288
      %p291 = scmp.ne.s32.totalorder %s276, %s290
      %p292 = scmp.eq.s32.totalorder %s35, 0
      %p293 = por %p291, %p292
      %s295 = sadd.s32 %s294, 1
      %p298 = scmp.eq.s32.totalorder %s29, 1
      %p299 = scmp.ne.s32.totalorder %s294, %s296
      %p300 = scmp.eq.s32.totalorder %s29, 0
      %p301 = por %p299, %p300
      %p302 = scmp.ne.s32.totalorder %s294, %s296
      %p303 = scmp.eq.s32.totalorder %s34, 1
      %p304 = por %p302, %p303
      %p305 = scmp.ne.s32.totalorder %s296, %s297
      %p306 = scmp.eq.s32.totalorder %s34, 0
      %p307 = por %p305, %p306
      %p308 = scmp.ne.s32.totalorder %s296, %s297
      %p309 = scmp.eq.s32.totalorder %s35, 1
      %p310 = por %p308, %p309
      %p312 = scmp.ne.s32.totalorder %s297, %s311
      %p313 = scmp.eq.s32.totalorder %s35, 0
      %p314 = por %p312, %p313
      %s316 = sadd.s32 %s315, 1
      %p319 = scmp.eq.s32.totalorder %s29, 1
      %p320 = scmp.ne.s32.totalorder %s315, %s317
      %p321 = scmp.eq.s32.totalorder %s29, 0
      %p322 = por %p320, %p321
      %p323 = scmp.ne.s32.totalorder %s315, %s317
      %p324 = scmp.eq.s32.totalorder %s34, 1
      %p325 = por %p323, %p324
      %p326 = scmp.ne.s32.totalorder %s317, %s318
      %p327 = scmp.eq.s32.totalorder %s34, 0
      %p328 = por %p326, %p327
      %p329 = scmp.ne.s32.totalorder %s317, %s318
      %p330 = scmp.eq.s32.totalorder %s35, 1
      %p331 = por %p329, %p330
      %p333 = scmp.ne.s32.totalorder %s318, %s332
      %p334 = scmp.eq.s32.totalorder %s35, 0
      %p335 = por %p333, %p334
      %s337 = sadd.s32 %s336, 1
      %p340 = scmp.eq.s32.totalorder %s29, 1
      %p341 = scmp.ne.s32.totalorder %s336, %s338
      %p342 = scmp.eq.s32.totalorder %s29, 0
      %p343 = por %p341, %p342
      %p344 = scmp.ne.s32.totalorder %s336, %s338
      %p345 = scmp.eq.s32.totalorder %s34, 1
      %p346 = por %p344, %p345
      %p347 = scmp.ne.s32.totalorder %s338, %s339
      %p348 = scmp.eq.s32.totalorder %s34, 0
      %p349 = por %p347, %p348
      %p350 = scmp.ne.s32.totalorder %s338, %s339
      %p351 = scmp.eq.s32.totalorder %s35, 1
      %p352 = por %p350, %p351
      %p354 = scmp.ne.s32.totalorder %s339, %s353
      %p355 = scmp.eq.s32.totalorder %s35, 0
      %p356 = por %p354, %p355
      %s358 = sadd.s32 %s357, 1
      %p361 = scmp.eq.s32.totalorder %s29, 1
      %p362 = scmp.ne.s32.totalorder %s357, %s359
      %p363 = scmp.eq.s32.totalorder %s29, 0
      %p364 = por %p362, %p363
      %p365 = scmp.ne.s32.totalorder %s357, %s359
      %p366 = scmp.eq.s32.totalorder %s34, 1
      %p367 = por %p365, %p366
      %p368 = scmp.ne.s32.totalorder %s359, %s360
      %p369 = scmp.eq.s32.totalorder %s34, 0
      %p370 = por %p368, %p369
      %p371 = scmp.ne.s32.totalorder %s359, %s360
      %p372 = scmp.eq.s32.totalorder %s35, 1
      %p373 = por %p371, %p372
      %p375 = scmp.ne.s32.totalorder %s360, %s374
      %p376 = scmp.eq.s32.totalorder %s35, 0
      %p377 = por %p375, %p376
      %s378 = ssub.s32 %s29, %s36
      %p379 = scmp.eq.s32.totalorder %s378, 0
      %s381 = sadd.s32 %s380, 1
      %s382 = scalar_select %p379, %s380, %s381
      %p385 = pneg %p379
      %p386 = scmp.eq.s32.totalorder %s29, 1
      %p387 = por %p385, %p386
      %p388 = scmp.ne.s32.totalorder %s380, %s383
      %p389 = scmp.eq.s32.totalorder %s29, 0
      %p390 = por %p388, %p389
      %p391 = scmp.ne.s32.totalorder %s380, %s383
      %p392 = scmp.eq.s32.totalorder %s34, 1
      %p393 = por %p391, %p392
      %p394 = scmp.ne.s32.totalorder %s383, %s384
      %p395 = scmp.eq.s32.totalorder %s34, 0
      %p396 = por %p394, %p395
      %p397 = scmp.ne.s32.totalorder %s383, %s384
      %p398 = scmp.eq.s32.totalorder %s35, 1
      %p399 = por %p397, %p398
      %p401 = scmp.ne.s32.totalorder %s384, %s400
      %p402 = scmp.eq.s32.totalorder %s35, 0
      %p403 = por %p401, %p402
      %p404 = scmp.le.s32.totalorder 1, %s29
      %p405 = scmp.lt.s32.totalorder %s29, 3
      %p406 = pnand %p404, %p405
      %p407 = pneg %p406
      // Predicated region
      $region9: #{tpu_custom_call.1} parent=5 // pred_check
        _
      $region10: #{tpu_custom_call.1} parent=5 // pred_check_branch
        %409 = sbr.rel (%p406) target = $region12
      $region11: #{tpu_custom_call.1} parent=5 // pred_region
        %s410 = ssub.s32 %s29, 1
        // Predicated region
        $region13: #{tpu_custom_call.1} parent=11 // pred_check
          %p411 = pneg %p76
        $region14: #{tpu_custom_call.1} parent=11 // pred_check_branch
          %413 = sbr.rel (%p411) target = $region16
        $region15: #{tpu_custom_call.1} parent=11 // pred_region
          %415 = vsyncadd [#allocation7], 0
          %s417 = sshll.u32 %s1, 4
          %s418 = int_to_ptr.hbm [resolvable:$true] %s417
          %s419 = sshll.u32 [#allocation6], 4
          %s420 = int_to_ptr.vmem [resolvable:$true] %s419
          %422 = dma.hbm_to_vmem [thread:$0]  %s418, 32, %s420, [#allocation7]
        $region16: #{tpu_custom_call.1} parent=11 // pred_fallthru
          _
        // Predicated region
        $region17: #{tpu_custom_call.1} parent=11 // pred_check
          %p423 = pneg %p97
        $region18: #{tpu_custom_call.1} parent=11 // pred_check_branch
          %425 = sbr.rel (%p423) target = $region20
        $region19: #{tpu_custom_call.1} parent=11 // pred_region
          _
        $region20: #{tpu_custom_call.1} parent=11 // pred_fallthru
          _
        // Predicated region
        $region21: #{tpu_custom_call.1} parent=11 // pred_check
          %p426 = pneg %p118
        $region22: #{tpu_custom_call.1} parent=11 // pred_check_branch
          %428 = sbr.rel (%p426) target = $region24
        $region23: #{tpu_custom_call.1} parent=11 // pred_region
          _
        $region24: #{tpu_custom_call.1} parent=11 // pred_fallthru
          _
        // Predicated region
        $region25: #{tpu_custom_call.1} parent=11 // pred_check
          %p429 = pneg %p139
        $region26: #{tpu_custom_call.1} parent=11 // pred_check_branch
          %431 = sbr.rel (%p429) target = $region28
        $region27: #{tpu_custom_call.1} parent=11 // pred_region
          _
        $region28: #{tpu_custom_call.1} parent=11 // pred_fallthru
          _
        // Predicated region
        $region29: #{tpu_custom_call.1} parent=11 // pred_check
          %p432 = pneg %p160
        $region30: #{tpu_custom_call.1} parent=11 // pred_check_branch
          %434 = sbr.rel (%p432) target = $region32
        $region31: #{tpu_custom_call.1} parent=11 // pred_region
          _
        $region32: #{tpu_custom_call.1} parent=11 // pred_fallthru
          _
        // Predicated region
        $region33: #{tpu_custom_call.1} parent=11 // pred_check
          %p435 = pneg %p181
        $region34: #{tpu_custom_call.1} parent=11 // pred_check_branch
          %437 = sbr.rel (%p435) target = $region36
        $region35: #{tpu_custom_call.1} parent=11 // pred_region
          _
        $region36: #{tpu_custom_call.1} parent=11 // pred_fallthru
          _
        // Predicated region
        $region37: #{tpu_custom_call.1} parent=11 // pred_check
          %p438 = pneg %p202
        $region38: #{tpu_custom_call.1} parent=11 // pred_check_branch
          %440 = sbr.rel (%p438) target = $region40
        $region39: #{tpu_custom_call.1} parent=11 // pred_region
          _
        $region40: #{tpu_custom_call.1} parent=11 // pred_fallthru
          _
        // Predicated region
        $region41: #{tpu_custom_call.1} parent=11 // pred_check
          %p441 = pneg %p223
        $region42: #{tpu_custom_call.1} parent=11 // pred_check_branch
          %443 = sbr.rel (%p441) target = $region44
        $region43: #{tpu_custom_call.1} parent=11 // pred_region
          %445 = vsyncadd [#allocation7], 0
          %s446 = sshll.u32 %s8, 4
          %s447 = int_to_ptr.hbm [resolvable:$true] %s446
          %s448 = sshll.u32 [#allocation8], 4
          %s449 = int_to_ptr.vmem [resolvable:$true] %s448
          %454 = dma.hbm_to_vmem [thread:$0]  %s447, 512, %s449, [#allocation7], 128, 128, 8
        $region44: #{tpu_custom_call.1} parent=11 // pred_fallthru
          _
        // Predicated region
        $region45: #{tpu_custom_call.1} parent=11 // pred_check
          %p455 = pneg %p244
        $region46: #{tpu_custom_call.1} parent=11 // pred_check_branch
          %457 = sbr.rel (%p455) target = $region48
        $region47: #{tpu_custom_call.1} parent=11 // pred_region
          _
        $region48: #{tpu_custom_call.1} parent=11 // pred_fallthru
          _
        // Predicated region
        $region49: #{tpu_custom_call.1} parent=11 // pred_check
          %p458 = pneg %p265
        $region50: #{tpu_custom_call.1} parent=11 // pred_check_branch
          %460 = sbr.rel (%p458) target = $region52
        $region51: #{tpu_custom_call.1} parent=11 // pred_region
          _
        $region52: #{tpu_custom_call.1} parent=11 // pred_fallthru
          _
        // Predicated region
        $region53: #{tpu_custom_call.1} parent=11 // pred_check
          %p461 = pneg %p286
        $region54: #{tpu_custom_call.1} parent=11 // pred_check_branch
          %463 = sbr.rel (%p461) target = $region56
        $region55: #{tpu_custom_call.1} parent=11 // pred_region
          _
        $region56: #{tpu_custom_call.1} parent=11 // pred_fallthru
          _
        // Predicated region
        $region57: #{tpu_custom_call.1} parent=11 // pred_check
          %p464 = pneg %p307
        $region58: #{tpu_custom_call.1} parent=11 // pred_check_branch
          %466 = sbr.rel (%p464) target = $region60
        $region59: #{tpu_custom_call.1} parent=11 // pred_region
          _
        $region60: #{tpu_custom_call.1} parent=11 // pred_fallthru
          _
        // Predicated region
        $region61: #{tpu_custom_call.1} parent=11 // pred_check
          %p467 = pneg %p328
        $region62: #{tpu_custom_call.1} parent=11 // pred_check_branch
          %469 = sbr.rel (%p467) target = $region64
        $region63: #{tpu_custom_call.1} parent=11 // pred_region
          _
        $region64: #{tpu_custom_call.1} parent=11 // pred_fallthru
          _
        // Predicated region
        $region65: #{tpu_custom_call.1} parent=11 // pred_check
          %p470 = pneg %p349
        $region66: #{tpu_custom_call.1} parent=11 // pred_check_branch
          %472 = sbr.rel (%p470) target = $region68
        $region67: #{tpu_custom_call.1} parent=11 // pred_region
          _
        $region68: #{tpu_custom_call.1} parent=11 // pred_fallthru
          _
        // Predicated region
        $region69: #{tpu_custom_call.1} parent=11 // pred_check
          %p473 = pneg %p370
        $region70: #{tpu_custom_call.1} parent=11 // pred_check_branch
          %475 = sbr.rel (%p473) target = $region72
        $region71: #{tpu_custom_call.1} parent=11 // pred_region
          _
        $region72: #{tpu_custom_call.1} parent=11 // pred_fallthru
          _
      $region12: #{tpu_custom_call.1} parent=5 // pred_fallthru
        _
      %p476 = scmp.lt.s32.totalorder %s29, 2
      // Predicated region
      $region73: #{tpu_custom_call.1} parent=5 // pred_check
        %p477 = pneg %p476
      $region74: #{tpu_custom_call.1} parent=5 // pred_check_branch
        %479 = sbr.rel (%p477) target = $region76
      $region75: #{tpu_custom_call.1} parent=5 // pred_region
        // Predicated region
        $region77: #{tpu_custom_call.1} parent=75 // pred_check
          %p480 = pneg %p49
        $region78: #{tpu_custom_call.1} parent=75 // pred_check_branch
          %482 = sbr.rel (%p480) target = $region80
        $region79: #{tpu_custom_call.1} parent=75 // pred_region
          %s483 = sand.u32 %s39, 1
          %s484 = scalar_lea.sflag [#allocation4], %s483
          %s485 = sand.u32 %s39, 1
          %s486 = smul.addr %s485, 8
          %s487 = scalar_lea.vmem [#allocation3], %s486
          %489 = vsyncadd %s484, 0
          %s490 = smul.addr %s29, 8
          %s491 = scalar_lea.hbm %s0, %s490
          %s493 = sshll.u32 %s491, 4
          %s494 = int_to_ptr.hbm [resolvable:$true] %s493
          %s495 = sshll.u32 %s487, 4
          %s496 = int_to_ptr.vmem [resolvable:$true] %s495
          %498 = dma.hbm_to_vmem [thread:$0]  %s494, 128, %s496, %s484
        $region80: #{tpu_custom_call.1} parent=75 // pred_fallthru
          _
      $region76: #{tpu_custom_call.1} parent=5 // pred_fallthru
        _
      %p499 = scmp.le.s32.totalorder 1, %s29
      %p500 = scmp.lt.s32.totalorder %s29, 3
      %p501 = pnand %p499, %p500
      %p502 = pneg %p501
      // Predicated region
      $region81: #{tpu_custom_call.1} parent=5 // pred_check
        _
      $region82: #{tpu_custom_call.1} parent=5 // pred_check_branch
        %504 = sbr.rel (%p501) target = $region84
      $region83: #{tpu_custom_call.1} parent=5 // pred_region
        %s505 = ssub.s32 %s29, 1
        %s506 = sand.u32 %s42, 1
        %s507 = scalar_lea.sflag [#allocation4], %s506
        %s508 = sand.u32 %s42, 1
        %s509 = smul.addr %s508, 8
        %s510 = scalar_lea.vmem [#allocation3], %s509
        // Predicated region
        $region85: #{tpu_custom_call.1} parent=83 // pred_check
          %p511 = pneg %p55
        $region86: #{tpu_custom_call.1} parent=83 // pred_check_branch
          %513 = sbr.rel (%p511) target = $region88
        $region87: #{tpu_custom_call.1} parent=83 // pred_region
          %515 = dma.done %s507, 128
        $region88: #{tpu_custom_call.1} parent=83 // pred_fallthru
          _
        // Predicated region
        $region89: #{tpu_custom_call.1} parent=83 // pred_check
          %p516 = pneg %p76
        $region90: #{tpu_custom_call.1} parent=83 // pred_check_branch
          %518 = sbr.rel (%p516) target = $region92
        $region91: #{tpu_custom_call.1} parent=83 // pred_region
          %520 = dma.done [#allocation7], 32
        $region92: #{tpu_custom_call.1} parent=83 // pred_fallthru
          _
        // Predicated region
        $region93: #{tpu_custom_call.1} parent=83 // pred_check
          %p521 = pneg %p223
        $region94: #{tpu_custom_call.1} parent=83 // pred_check_branch
          %523 = sbr.rel (%p521) target = $region96
        $region95: #{tpu_custom_call.1} parent=83 // pred_region
          %525 = dma.done [#allocation7], 512
        $region96: #{tpu_custom_call.1} parent=83 // pred_fallthru
          _
        %s526 = sand.u32 %s42, 1
        %s527 = scalar_lea.sflag [#allocation4], %s526
        %s528 = sand.u32 %s42, 1
        %s529 = smul.addr %s528, 8
        %s530 = scalar_lea.vmem [#allocation3], %s529
        %p531 = pneg %p55
        %p532 = pneg %p52
        %p533 = pneg %p76
        %p534 = pneg %p73
        %p535 = pneg %p97
        %p536 = pneg %p94
        %p537 = pneg %p118
        %p538 = pneg %p115
        %p539 = pneg %p139
        %p540 = pneg %p136
        %p541 = pneg %p160
        %p542 = pneg %p157
        %p543 = pneg %p181
        %p544 = pneg %p178
        %p545 = pneg %p202
        %p546 = pneg %p199
        %p547 = pneg %p223
        %p548 = pneg %p220
        %p549 = pneg %p244
        %p550 = pneg %p241
        %p551 = pneg %p265
        %p552 = pneg %p262
        %p553 = pneg %p286
        %p554 = pneg %p283
        %p555 = pneg %p307
        %p556 = pneg %p304
        %p557 = pneg %p328
        %p558 = pneg %p325
        %p559 = pneg %p349
        %p560 = pneg %p346
        %p561 = pneg %p370
        %p562 = pneg %p367
        %p563 = pneg %p396
        %p564 = pneg %p393
        %s565 = sand.u32 %s383, 1
        %s566 = scalar_lea.sflag [#allocation5], %s565
        %s567 = sand.u32 %s383, 1
        %s568 = smul.addr %s567, 8
        %s569 = scalar_lea.vmem [#allocation9], %s568
        %v570 = vld [vmem:[%s510] sm:$0xff]
        %s571 = scalar_lea.vmem [#allocation6], %s34
        %v572 = vld [vmem:[%s571] sm:$0x1]
        %vm573 = vcmp.gt.f32.partialorder %v572, 0.0
        %v574 = vsel %vm573, 1, 0
        %v575 = vperm.slane %v574, 0
        %vm576 = vcmp.eq.s32.totalorder %v575, 1
        %v577 = vld [vmem:[%s2] sm:$0xff]
        %v578 = vld [vmem:[%s2 + $0x8] sm:$0xff]
        %v579 = vld [vmem:[%s2 + $0x10] sm:$0xff]
        %v580 = vld [vmem:[%s2 + $0x18] sm:$0xff]
        %v581 = vld [vmem:[%s3] sm:$0x1]
        %v583 = vperm.slane %v581, 0
        %vm585 = vcmask 261120
        %v587 = vsel %vm585, %v570, 0
        %589 = vmatpush.msra.mxu0 0.0
        %590 = vmatpush.msra.mxu0 0.0
        %591 = vmatpush.msra.mxu0 0.0
        %592 = vmatpush.msra.mxu0 0.0
        %593 = vmatpush.msra.mxu0 0.0
        %594 = vmatpush.msra.mxu0 0.0
        %595 = vmatpush.msra.mxu0 0.0
        %596 = vmatpush.msra.mxu0 0.0
        %597 = vmatpush.msra.mxu0 0.0
        %598 = vmatpush.msra.mxu0 0.0
        %599 = vmatpush.msra.mxu0 0.0
        %600 = vmatpush.msra.mxu0 0.0
        %601 = vmatpush.msra.mxu0 %v580
        %602 = vmatpush.msra.mxu0 %v579
        %603 = vmatpush.msra.mxu0 %v578
        %604 = vmatpush.msra.mxu0 %v577
        %605 = vmatmul.f32.gmra.mxu0 %v587
        %v606 = vpop.f32.mrf.mxu0
        %v607 = vadd.f32 %v583, %v606
        %608 = vdwg.mxu0
        %v609 = vld [vmem:[%s4] sm:$0xff]
        %v610 = vld [vmem:[%s4 + $0x8] sm:$0xff]
        %v611 = vld [vmem:[%s4 + $0x10] sm:$0xff]
        %v612 = vld [vmem:[%s4 + $0x18] sm:$0xff]
        %v613 = vld [vmem:[%s5] sm:$0x1]
        %v615 = vperm.slane %v613, 0
        %617 = vmatpush.msra.mxu0 0.0
        %618 = vmatpush.msra.mxu0 0.0
        %619 = vmatpush.msra.mxu0 0.0
        %620 = vmatpush.msra.mxu0 0.0
        %621 = vmatpush.msra.mxu0 0.0
        %622 = vmatpush.msra.mxu0 0.0
        %623 = vmatpush.msra.mxu0 0.0
        %624 = vmatpush.msra.mxu0 0.0
        %625 = vmatpush.msra.mxu0 0.0
        %626 = vmatpush.msra.mxu0 0.0
        %627 = vmatpush.msra.mxu0 0.0
        %628 = vmatpush.msra.mxu0 0.0
        %629 = vmatpush.msra.mxu0 %v612
        %630 = vmatpush.msra.mxu0 %v611
        %631 = vmatpush.msra.mxu0 %v610
        %632 = vmatpush.msra.mxu0 %v609
        %633 = vmatmul.f32.gmra.mxu0 %v587
        %v634 = vpop.f32.mrf.mxu0
        %v635 = vadd.f32 %v615, %v634
        %636 = vdwg.mxu0
        %vm637 = vcmask 64512
        %v639 = vsel %vm637, %v607, 0
        %v642 = vsel %vm637, %v635, 0
        %644 = vmatpush.xpose.msra.mxu0 0.0
        %645 = vmatpush.xpose.msra.mxu0 0.0
        %646 = vmatpush.xpose.msra.mxu0 0.0
        %647 = vmatpush.xpose.msra.mxu0 0.0
        %648 = vmatpush.xpose.msra.mxu0 0.0
        %649 = vmatpush.xpose.msra.mxu0 0.0
        %650 = vmatpush.xpose.msra.mxu0 0.0
        %651 = vmatpush.xpose.msra.mxu0 0.0
        %652 = vmatpush.xpose.msra.mxu0 0.0
        %653 = vmatpush.xpose.msra.mxu0 0.0
        %654 = vmatpush.xpose.msra.mxu0 0.0
        %655 = vmatpush.xpose.msra.mxu0 0.0
        %656 = vmatpush.xpose.msra.mxu0 0.0
        %657 = vmatpush.xpose.msra.mxu0 0.0
        %658 = vmatpush.xpose.msra.mxu0 0.0
        %659 = vmatpush.xpose.msra.mxu0 %v642
        %660 = vmatmul.f32.gmra.mxu0 %v639
        %v661 = vpop.f32.mrf.mxu0
        %v662 = vadd.f32 0.0, %v661
        %663 = vdwg.mxu0
        %v664 = vsel %vm576, %v662, -1e+32
        %v665 = vsel %vm637, %v664, -inf
        %666 = vmax.xlane.f32.xlu0 %v665
        %v667 = vpop.xlane.xlu0 %666
        %v668 = vsub.f32 %v664, %v667
        %v669 = vmul.f32 %v668, 1.442695
        %v670 = vpow.pop %v669
        %v671 = vsel %vm637, %v670, 0.0
        %672 = vadd.xlane.f32.xlu0 %v671
        %v673 = vpop.xlane.xlu0 %672
        %v674 = vrcp.pop %v673
        %v675 = vmul.f32 %v673, %v674
        %v676 = vsub.f32 1.0, %v675
        %v677 = vmul.f32 %v674, %v676
        %v678 = vadd.f32 %v674, %v677
        %vm679 = vweird.f32 %v673
        %vm680 = vweird.f32 %v674
        %vm681 = vmor %vm679, %vm680
        %v682 = vsel %vm681, %v674, %v678
        %v683 = vand.u32 2147483647, %v673
        %vm684 = vcmp.eq.f32.partialorder %v683, 8.507059e+37
        %v685 = vand.u32 %v673, 2147483648
        %v686 = vor.u32 1.1754944e-38, %v685
        %v687 = vsel %vm684, %v686, %v682
        %v688 = vmul.f32 %v670, %v687
        %689 = vrot.lane.b32.xlu0 %v635, 96
        %v690 = vpop.permute.xlu0 %689
        %v693 = vsel %vm637, %v688, 0
        %695 = vmatpush.msra.mxu0 0.0
        %696 = vmatpush.msra.mxu0 0.0
        %697 = vmatpush.msra.mxu0 0.0
        %698 = vmatpush.msra.mxu0 0.0
        %699 = vmatpush.msra.mxu0 0.0
        %700 = vmatpush.msra.mxu0 0.0
        %701 = vmatpush.msra.mxu0 0.0
        %702 = vmatpush.msra.mxu0 0.0
        %703 = vmatpush.msra.mxu0 0.0
        %704 = vmatpush.msra.mxu0 0.0
        %705 = vmatpush.msra.mxu0 0.0
        %706 = vmatpush.msra.mxu0 0.0
        %707 = vmatpush.msra.mxu0 0.0
        %708 = vmatpush.msra.mxu0 0.0
        %709 = vmatpush.msra.mxu0 0.0
        %710 = vmatpush.msra.mxu0 %v690
        %711 = vmatmul.f32.gmra.mxu0 %v693
        %v712 = vpop.f32.mrf.mxu0
        %v713 = vadd.f32 0.0, %v712
        %714 = vdwg.mxu0
        %715 = vst.msk [vmem:[#allocation2] sm:$0xff] %vm637, %v713
        %716 = vrot.lane.b32.xlu0 %v607, 120
        %v717 = vpop.permute.xlu0 %716
        %718 = vrot.lane.b32.xlu0 %v635, 120
        %v719 = vpop.permute.xlu0 %718
        %v720 = vsel %vm637, %v717, 0
        %v722 = vsel %vm637, %v719, 0
        %724 = vmatpush.xpose.msra.mxu0 0.0
        %725 = vmatpush.xpose.msra.mxu0 0.0
        %726 = vmatpush.xpose.msra.mxu0 0.0
        %727 = vmatpush.xpose.msra.mxu0 0.0
        %728 = vmatpush.xpose.msra.mxu0 0.0
        %729 = vmatpush.xpose.msra.mxu0 0.0
        %730 = vmatpush.xpose.msra.mxu0 0.0
        %731 = vmatpush.xpose.msra.mxu0 0.0
        %732 = vmatpush.xpose.msra.mxu0 0.0
        %733 = vmatpush.xpose.msra.mxu0 0.0
        %734 = vmatpush.xpose.msra.mxu0 0.0
        %735 = vmatpush.xpose.msra.mxu0 0.0
        %736 = vmatpush.xpose.msra.mxu0 0.0
        %737 = vmatpush.xpose.msra.mxu0 0.0
        %738 = vmatpush.xpose.msra.mxu0 0.0
        %739 = vmatpush.xpose.msra.mxu0 %v722
        %740 = vmatmul.f32.gmra.mxu0 %v720
        %v741 = vpop.f32.mrf.mxu0
        %v742 = vadd.f32 0.0, %v741
        %743 = vdwg.mxu0
        %v744 = vsel %vm576, %v742, -1e+32
        %v745 = vsel %vm637, %v744, -inf
        %746 = vmax.xlane.f32.xlu0 %v745
        %v747 = vpop.xlane.xlu0 %746
        %v748 = vsub.f32 %v744, %v747
        %v749 = vmul.f32 %v748, 1.442695
        %v750 = vpow.pop %v749
        %v751 = vsel %vm637, %v750, 0.0
        %752 = vadd.xlane.f32.xlu0 %v751
        %v753 = vpop.xlane.xlu0 %752
        %v754 = vrcp.pop %v753
        %v755 = vmul.f32 %v753, %v754
        %v756 = vsub.f32 1.0, %v755
        %v757 = vmul.f32 %v754, %v756
        %v758 = vadd.f32 %v754, %v757
        %vm759 = vweird.f32 %v753
        %vm760 = vweird.f32 %v754
        %vm761 = vmor %vm759, %vm760
        %v762 = vsel %vm761, %v754, %v758
        %v763 = vand.u32 2147483647, %v753
        %vm764 = vcmp.eq.f32.partialorder %v763, 8.507059e+37
        %v765 = vand.u32 %v753, 2147483648
        %v766 = vor.u32 1.1754944e-38, %v765
        %v767 = vsel %vm764, %v766, %v762
        %v768 = vmul.f32 %v750, %v767
        %769 = vrot.lane.b32.xlu0 %v635, 88
        %v770 = vpop.permute.xlu0 %769
        %v773 = vsel %vm637, %v768, 0
        %775 = vmatpush.msra.mxu0 0.0
        %776 = vmatpush.msra.mxu0 0.0
        %777 = vmatpush.msra.mxu0 0.0
        %778 = vmatpush.msra.mxu0 0.0
        %779 = vmatpush.msra.mxu0 0.0
        %780 = vmatpush.msra.mxu0 0.0
        %781 = vmatpush.msra.mxu0 0.0
        %782 = vmatpush.msra.mxu0 0.0
        %783 = vmatpush.msra.mxu0 0.0
        %784 = vmatpush.msra.mxu0 0.0
        %785 = vmatpush.msra.mxu0 0.0
        %786 = vmatpush.msra.mxu0 0.0
        %787 = vmatpush.msra.mxu0 0.0
        %788 = vmatpush.msra.mxu0 0.0
        %789 = vmatpush.msra.mxu0 0.0
        %790 = vmatpush.msra.mxu0 %v770
        %791 = vmatmul.f32.gmra.mxu0 %v773
        %v792 = vpop.f32.mrf.mxu0
        %v793 = vadd.f32 0.0, %v792
        %794 = vdwg.mxu0
        %796 = vrot.lane.b32.xlu0 %v793, 8
        %v797 = vpop.permute.xlu0 %796
        %vm799 = vcmask 130112
        %800 = vst.msk [vmem:[#allocation2] sm:$0xff] %vm799, %v797
        %801 = vrot.lane.b32.xlu0 %v607, 112
        %v802 = vpop.permute.xlu0 %801
        %803 = vrot.lane.b32.xlu0 %v635, 112
        %v804 = vpop.permute.xlu0 %803
        %v805 = vsel %vm637, %v802, 0
        %v807 = vsel %vm637, %v804, 0
        %809 = vmatpush.xpose.msra.mxu0 0.0
        %810 = vmatpush.xpose.msra.mxu0 0.0
        %811 = vmatpush.xpose.msra.mxu0 0.0
        %812 = vmatpush.xpose.msra.mxu0 0.0
        %813 = vmatpush.xpose.msra.mxu0 0.0
        %814 = vmatpush.xpose.msra.mxu0 0.0
        %815 = vmatpush.xpose.msra.mxu0 0.0
        %816 = vmatpush.xpose.msra.mxu0 0.0
        %817 = vmatpush.xpose.msra.mxu0 0.0
        %818 = vmatpush.xpose.msra.mxu0 0.0
        %819 = vmatpush.xpose.msra.mxu0 0.0
        %820 = vmatpush.xpose.msra.mxu0 0.0
        %821 = vmatpush.xpose.msra.mxu0 0.0
        %822 = vmatpush.xpose.msra.mxu0 0.0
        %823 = vmatpush.xpose.msra.mxu0 0.0
        %824 = vmatpush.xpose.msra.mxu0 %v807
        %825 = vmatmul.f32.gmra.mxu0 %v805
        %v826 = vpop.f32.mrf.mxu0
        %v827 = vadd.f32 0.0, %v826
        %828 = vdwg.mxu0
        %v829 = vsel %vm576, %v827, -1e+32
        %v830 = vsel %vm637, %v829, -inf
        %831 = vmax.xlane.f32.xlu0 %v830
        %v832 = vpop.xlane.xlu0 %831
        %v833 = vsub.f32 %v829, %v832
        %v834 = vmul.f32 %v833, 1.442695
        %v835 = vpow.pop %v834
        %v836 = vsel %vm637, %v835, 0.0
        %837 = vadd.xlane.f32.xlu0 %v836
        %v838 = vpop.xlane.xlu0 %837
        %v839 = vrcp.pop %v838
        %v840 = vmul.f32 %v838, %v839
        %v841 = vsub.f32 1.0, %v840
        %v842 = vmul.f32 %v839, %v841
        %v843 = vadd.f32 %v839, %v842
        %vm844 = vweird.f32 %v838
        %vm845 = vweird.f32 %v839
        %vm846 = vmor %vm844, %vm845
        %v847 = vsel %vm846, %v839, %v843
        %v848 = vand.u32 2147483647, %v838
        %vm849 = vcmp.eq.f32.partialorder %v848, 8.507059e+37
        %v850 = vand.u32 %v838, 2147483648
        %v851 = vor.u32 1.1754944e-38, %v850
        %v852 = vsel %vm849, %v851, %v847
        %v853 = vmul.f32 %v835, %v852
        %854 = vrot.lane.b32.xlu0 %v635, 80
        %v855 = vpop.permute.xlu0 %854
        %v858 = vsel %vm637, %v853, 0
        %860 = vmatpush.msra.mxu0 0.0
        %861 = vmatpush.msra.mxu0 0.0
        %862 = vmatpush.msra.mxu0 0.0
        %863 = vmatpush.msra.mxu0 0.0
        %864 = vmatpush.msra.mxu0 0.0
        %865 = vmatpush.msra.mxu0 0.0
        %866 = vmatpush.msra.mxu0 0.0
        %867 = vmatpush.msra.mxu0 0.0
        %868 = vmatpush.msra.mxu0 0.0
        %869 = vmatpush.msra.mxu0 0.0
        %870 = vmatpush.msra.mxu0 0.0
        %871 = vmatpush.msra.mxu0 0.0
        %872 = vmatpush.msra.mxu0 0.0
        %873 = vmatpush.msra.mxu0 0.0
        %874 = vmatpush.msra.mxu0 0.0
        %875 = vmatpush.msra.mxu0 %v855
        %876 = vmatmul.f32.gmra.mxu0 %v858
        %v877 = vpop.f32.mrf.mxu0
        %v878 = vadd.f32 0.0, %v877
        %879 = vdwg.mxu0
        %881 = vrot.lane.b32.xlu0 %v878, 16
        %v882 = vpop.permute.xlu0 %881
        %vm884 = vcmask 195712
        %885 = vst.msk [vmem:[#allocation2] sm:$0xff] %vm884, %v882
        %886 = vrot.lane.b32.xlu0 %v607, 104
        %v887 = vpop.permute.xlu0 %886
        %888 = vrot.lane.b32.xlu0 %v635, 104
        %v889 = vpop.permute.xlu0 %888
        %v890 = vsel %vm637, %v887, 0
        %v892 = vsel %vm637, %v889, 0
        %894 = vmatpush.xpose.msra.mxu0 0.0
        %895 = vmatpush.xpose.msra.mxu0 0.0
        %896 = vmatpush.xpose.msra.mxu0 0.0
        %897 = vmatpush.xpose.msra.mxu0 0.0
        %898 = vmatpush.xpose.msra.mxu0 0.0
        %899 = vmatpush.xpose.msra.mxu0 0.0
        %900 = vmatpush.xpose.msra.mxu0 0.0
        %901 = vmatpush.xpose.msra.mxu0 0.0
        %902 = vmatpush.xpose.msra.mxu0 0.0
        %903 = vmatpush.xpose.msra.mxu0 0.0
        %904 = vmatpush.xpose.msra.mxu0 0.0
        %905 = vmatpush.xpose.msra.mxu0 0.0
        %906 = vmatpush.xpose.msra.mxu0 0.0
        %907 = vmatpush.xpose.msra.mxu0 0.0
        %908 = vmatpush.xpose.msra.mxu0 0.0
        %909 = vmatpush.xpose.msra.mxu0 %v892
        %910 = vmatmul.f32.gmra.mxu0 %v890
        %v911 = vpop.f32.mrf.mxu0
        %v912 = vadd.f32 0.0, %v911
        %913 = vdwg.mxu0
        %v914 = vsel %vm576, %v912, -1e+32
        %v915 = vsel %vm637, %v914, -inf
        %916 = vmax.xlane.f32.xlu0 %v915
        %v917 = vpop.xlane.xlu0 %916
        %v918 = vsub.f32 %v914, %v917
        %v919 = vmul.f32 %v918, 1.442695
        %v920 = vpow.pop %v919
        %v921 = vsel %vm637, %v920, 0.0
        %922 = vadd.xlane.f32.xlu0 %v921
        %v923 = vpop.xlane.xlu0 %922
        %v924 = vrcp.pop %v923
        %v925 = vmul.f32 %v923, %v924
        %v926 = vsub.f32 1.0, %v925
        %v927 = vmul.f32 %v924, %v926
        %v928 = vadd.f32 %v924, %v927
        %vm929 = vweird.f32 %v923
        %vm930 = vweird.f32 %v924
        %vm931 = vmor %vm929, %vm930
        %v932 = vsel %vm931, %v924, %v928
        %v933 = vand.u32 2147483647, %v923
        %vm934 = vcmp.eq.f32.partialorder %v933, 8.507059e+37
        %v935 = vand.u32 %v923, 2147483648
        %v936 = vor.u32 1.1754944e-38, %v935
        %v937 = vsel %vm934, %v936, %v932
        %v938 = vmul.f32 %v920, %v937
        %939 = vrot.lane.b32.xlu0 %v635, 72
        %v940 = vpop.permute.xlu0 %939
        %v943 = vsel %vm637, %v938, 0
        %945 = vmatpush.msra.mxu0 0.0
        %946 = vmatpush.msra.mxu0 0.0
        %947 = vmatpush.msra.mxu0 0.0
        %948 = vmatpush.msra.mxu0 0.0
        %949 = vmatpush.msra.mxu0 0.0
        %950 = vmatpush.msra.mxu0 0.0
        %951 = vmatpush.msra.mxu0 0.0
        %952 = vmatpush.msra.mxu0 0.0
        %953 = vmatpush.msra.mxu0 0.0
        %954 = vmatpush.msra.mxu0 0.0
        %955 = vmatpush.msra.mxu0 0.0
        %956 = vmatpush.msra.mxu0 0.0
        %957 = vmatpush.msra.mxu0 0.0
        %958 = vmatpush.msra.mxu0 0.0
        %959 = vmatpush.msra.mxu0 0.0
        %960 = vmatpush.msra.mxu0 %v940
        %961 = vmatmul.f32.gmra.mxu0 %v943
        %v962 = vpop.f32.mrf.mxu0
        %v963 = vadd.f32 0.0, %v962
        %964 = vdwg.mxu0
        %966 = vrot.lane.b32.xlu0 %v963, 24
        %v967 = vpop.permute.xlu0 %966
        %vm969 = vcmask 261312
        %970 = vst.msk [vmem:[#allocation2] sm:$0xff] %vm969, %v967
        %v971 = vld [vmem:[#allocation2] sm:$0xff]
        %v972 = vld [vmem:[%s6] sm:$0xff]
        %v973 = vld [vmem:[%s6 + $0x8] sm:$0xff]
        %v974 = vld [vmem:[%s6 + $0x10] sm:$0xff]
        %v975 = vld [vmem:[%s6 + $0x18] sm:$0xff]
        %v976 = vld [vmem:[%s7] sm:$0x1]
        %v978 = vperm.slane %v976, 0
        %v981 = vsel %vm585, %v971, 0
        %983 = vmatpush.msra.mxu0 0.0
        %984 = vmatpush.msra.mxu0 0.0
        %985 = vmatpush.msra.mxu0 0.0
        %986 = vmatpush.msra.mxu0 0.0
        %987 = vmatpush.msra.mxu0 0.0
        %988 = vmatpush.msra.mxu0 0.0
        %989 = vmatpush.msra.mxu0 0.0
        %990 = vmatpush.msra.mxu0 0.0
        %991 = vmatpush.msra.mxu0 0.0
        %992 = vmatpush.msra.mxu0 0.0
        %993 = vmatpush.msra.mxu0 0.0
        %994 = vmatpush.msra.mxu0 0.0
        %995 = vmatpush.msra.mxu0 %v975
        %996 = vmatpush.msra.mxu0 %v974
        %997 = vmatpush.msra.mxu0 %v973
        %998 = vmatpush.msra.mxu0 %v972
        %999 = vmatmul.f32.gmra.mxu0 %v981
        %v1000 = vpop.f32.mrf.mxu0
        %v1001 = vadd.f32 %v978, %v1000
        %1002 = vdwg.mxu0
        %v1003 = vadd.f32 %v570, %v1001
        %v1004 = vld [vmem:[%s12] sm:$0x1]
        %v1005 = vld [vmem:[%s13] sm:$0x1]
        %v1006 = vsel %vm585, %v1003, 0.0
        %1007 = vadd.xlane.f32.xlu0 %v1006
        %v1008 = vpop.xlane.xlu0 %1007
        %v1009 = vrcp.pop 32.0
        %v1010 = vmul.f32 32.0, %v1009
        %v1011 = vsub.f32 1.0, %v1010
        %v1012 = vmul.f32 %v1009, %v1011
        %v1013 = vadd.f32 %v1009, %v1012
        %vm1014 = vweird.f32 %v1009
        %v1015 = vsel %vm1014, %v1009, %v1013
        %v1016 = vmul.f32 %v1008, %v1015
        %v1017 = vsub.f32 %v1003, %v1016
        %v1018 = vmul.f32 %v1017, %v1017
        %v1019 = vsel %vm585, %v1018, 0.0
        %1020 = vadd.xlane.f32.xlu0 %v1019
        %v1021 = vpop.xlane.xlu0 %1020
        %v1022 = vmul.f32 %v1021, %v1015
        %v1023 = vrsqrt.pop %v1022
        %v1024 = vmul.f32 %v1023, %v1022
        %v1025 = vmul.f32 %v1024, %v1023
        %v1026 = vmul.f32 0.5, %v1025
        %v1027 = vsub.f32 1.5, %v1026
        %v1028 = vmul.f32 %v1023, %v1027
        %v1029 = vmul.f32 %v1022, %v1028
        %vm1030 = vcmp.eq.f32.partialorder %v1022, inf
        %v1031 = vsel %vm1030, %v1022, %v1029
        %vm1032 = vcmp.eq.f32.partialorder %v1022, 0.0
        %v1033 = vand.u32 %v1022, 2147483648
        %v1034 = vsel %vm1032, %v1033, %v1031
        %v1035 = vadd.f32 %v1034, 1e-06
        %v1036 = vrcp.pop %v1035
        %v1037 = vmul.f32 %v1035, %v1036
        %v1038 = vsub.f32 1.0, %v1037
        %v1039 = vmul.f32 %v1036, %v1038
        %v1040 = vadd.f32 %v1036, %v1039
        %vm1041 = vweird.f32 %v1035
        %vm1042 = vweird.f32 %v1036
        %vm1043 = vmor %vm1041, %vm1042
        %v1044 = vsel %vm1043, %v1036, %v1040
        %v1045 = vand.u32 2147483647, %v1035
        %vm1046 = vcmp.eq.f32.partialorder %v1045, 8.507059e+37
        %v1047 = vand.u32 %v1035, 2147483648
        %v1048 = vor.u32 1.1754944e-38, %v1047
        %v1049 = vsel %vm1046, %v1048, %v1044
        %v1051 = vperm.slane %v1004, 0
        %v1053 = vmul.f32 %v1051, %v1017
        %v1054 = vmul.f32 %v1053, %v1049
        %v1056 = vperm.slane %v1005, 0
        %v1058 = vadd.f32 %v1054, %v1056
        %v1059 = vld [vmem:[#allocation8] sm:$0xff]
        %v1060 = vld [vmem:[#allocation8 + $0x8] sm:$0xff]
        %v1061 = vld [vmem:[#allocation8 + $0x10] sm:$0xff]
        %v1062 = vld [vmem:[#allocation8 + $0x18] sm:$0xff]
        %v1063 = vld [vmem:[%s9] sm:$0x1]
        %v1065 = vperm.slane %v1063, 0
        %v1068 = vsel %vm585, %v1058, 0
        %1070 = vmatpush.msra.mxu0 0.0
        %1071 = vmatpush.msra.mxu0 0.0
        %1072 = vmatpush.msra.mxu0 0.0
        %1073 = vmatpush.msra.mxu0 0.0
        %1074 = vmatpush.msra.mxu0 0.0
        %1075 = vmatpush.msra.mxu0 0.0
        %1076 = vmatpush.msra.mxu0 0.0
        %1077 = vmatpush.msra.mxu0 0.0
        %1078 = vmatpush.msra.mxu0 0.0
        %1079 = vmatpush.msra.mxu0 0.0
        %1080 = vmatpush.msra.mxu0 0.0
        %1081 = vmatpush.msra.mxu0 0.0
        %1082 = vmatpush.msra.mxu0 %v1062
        %1083 = vmatpush.msra.mxu0 %v1061
        %1084 = vmatpush.msra.mxu0 %v1060
        %1085 = vmatpush.msra.mxu0 %v1059
        %1086 = vmatmul.f32.gmra.mxu0 %v1068
        %v1087 = vpop.f32.mrf.mxu0
        %v1088 = vadd.f32 %v1065, %v1087
        %1089 = vdwg.mxu0
        %v1090 = vmax.f32 %v1088, 0.0
        %v1091 = vld [vmem:[%s10] sm:$0xff]
        %v1092 = vld [vmem:[%s10 + $0x8] sm:$0xff]
        %v1093 = vld [vmem:[%s10 + $0x10] sm:$0xff]
        %v1094 = vld [vmem:[%s10 + $0x18] sm:$0xff]
        %v1095 = vld [vmem:[%s10 + $0x20] sm:$0xff]
        %v1096 = vld [vmem:[%s10 + $0x28] sm:$0xff]
        %v1097 = vld [vmem:[%s10 + $0x30] sm:$0xff]
        %v1098 = vld [vmem:[%s10 + $0x38] sm:$0xff]
        %v1099 = vld [vmem:[%s11] sm:$0x1]
        %v1101 = vperm.slane %v1099, 0
        %vm1103 = vcmask 523264
        %v1105 = vsel %vm1103, %v1090, 0
        %1107 = vmatpush.msra.mxu0 0.0
        %1108 = vmatpush.msra.mxu0 0.0
        %1109 = vmatpush.msra.mxu0 0.0
        %1110 = vmatpush.msra.mxu0 0.0
        %1111 = vmatpush.msra.mxu0 0.0
        %1112 = vmatpush.msra.mxu0 0.0
        %1113 = vmatpush.msra.mxu0 0.0
        %1114 = vmatpush.msra.mxu0 0.0
        %1115 = vmatpush.msra.mxu0 %v1098
        %1116 = vmatpush.msra.mxu0 %v1097
        %1117 = vmatpush.msra.mxu0 %v1096
        %1118 = vmatpush.msra.mxu0 %v1095
        %1119 = vmatpush.msra.mxu0 %v1094
        %1120 = vmatpush.msra.mxu0 %v1093
        %1121 = vmatpush.msra.mxu0 %v1092
        %1122 = vmatpush.msra.mxu0 %v1091
        %1123 = vmatmul.f32.gmra.mxu0 %v1105
        %v1124 = vpop.f32.mrf.mxu0
        %v1125 = vadd.f32 %v1101, %v1124
        %1126 = vdwg.mxu0
        %v1127 = vadd.f32 %v1058, %v1125
        %v1128 = vld [vmem:[%s14] sm:$0x1]
        %v1129 = vld [vmem:[%s15] sm:$0x1]
        %v1130 = vsel %vm585, %v1127, 0.0
        %1131 = vadd.xlane.f32.xlu0 %v1130
        %v1132 = vpop.xlane.xlu0 %1131
        %v1133 = vmul.f32 %v1132, %v1015
        %v1134 = vsub.f32 %v1127, %v1133
        %v1135 = vmul.f32 %v1134, %v1134
        %v1136 = vsel %vm585, %v1135, 0.0
        %1137 = vadd.xlane.f32.xlu0 %v1136
        %v1138 = vpop.xlane.xlu0 %1137
        %v1139 = vmul.f32 %v1138, %v1015
        %v1140 = vrsqrt.pop %v1139
        %v1141 = vmul.f32 %v1140, %v1139
        %v1142 = vmul.f32 %v1141, %v1140
        %v1143 = vmul.f32 0.5, %v1142
        %v1144 = vsub.f32 1.5, %v1143
        %v1145 = vmul.f32 %v1140, %v1144
        %v1146 = vmul.f32 %v1139, %v1145
        %vm1147 = vcmp.eq.f32.partialorder %v1139, inf
        %v1148 = vsel %vm1147, %v1139, %v1146
        %vm1149 = vcmp.eq.f32.partialorder %v1139, 0.0
        %v1150 = vand.u32 %v1139, 2147483648
        %v1151 = vsel %vm1149, %v1150, %v1148
        %v1152 = vadd.f32 %v1151, 1e-06
        %v1153 = vrcp.pop %v1152
        %v1154 = vmul.f32 %v1152, %v1153
        %v1155 = vsub.f32 1.0, %v1154
        %v1156 = vmul.f32 %v1153, %v1155
        %v1157 = vadd.f32 %v1153, %v1156
        %vm1158 = vweird.f32 %v1152
        %vm1159 = vweird.f32 %v1153
        %vm1160 = vmor %vm1158, %vm1159
        %v1161 = vsel %vm1160, %v1153, %v1157
        %v1162 = vand.u32 2147483647, %v1152
        %vm1163 = vcmp.eq.f32.partialorder %v1162, 8.507059e+37
        %v1164 = vand.u32 %v1152, 2147483648
        %v1165 = vor.u32 1.1754944e-38, %v1164
        %v1166 = vsel %vm1163, %v1165, %v1161
        %v1168 = vperm.slane %v1128, 0
        %v1170 = vmul.f32 %v1168, %v1134
        %v1171 = vmul.f32 %v1170, %v1166
        %v1173 = vperm.slane %v1129, 0
        %v1175 = vadd.f32 %v1171, %v1173
        %1176 = vst.msk [vmem:[%s569] sm:$0xff] %vm585, %v1175
        %s1177 = sand.u32 %s383, 1
        %s1178 = scalar_lea.sflag [#allocation5], %s1177
        %s1179 = sand.u32 %s383, 1
        %s1180 = smul.addr %s1179, 8
        %s1181 = scalar_lea.vmem [#allocation9], %s1180
        // Predicated region
        $region97: #{tpu_custom_call.1} parent=83 // pred_check
          %p1182 = pneg %p393
        $region98: #{tpu_custom_call.1} parent=83 // pred_check_branch
          %1184 = sbr.rel (%p1182) target = $region100
        $region99: #{tpu_custom_call.1} parent=83 // pred_region
          %1186 = vsyncadd %s1178, 0
          %s1187 = smul.addr %s34, 8
          %s1188 = scalar_lea.hbm %s16, %s1187
          %s1190 = sshll.u32 %s1181, 4
          %s1191 = int_to_ptr.vmem [resolvable:$true] %s1190
          %s1192 = sshll.u32 %s1188, 4
          %s1193 = int_to_ptr.hbm [resolvable:$true] %s1192
          %1195 = dma.vmem_to_hbm [thread:$0]  %s1191, 128, %s1193, %s1178
        $region100: #{tpu_custom_call.1} parent=83 // pred_fallthru
          _
      $region84: #{tpu_custom_call.1} parent=5 // pred_fallthru
        _
      %p1196 = scmp.le.s32.totalorder 2, %s29
      // Predicated region
      $region101: #{tpu_custom_call.1} parent=5 // pred_check
        %p1197 = pneg %p1196
      $region102: #{tpu_custom_call.1} parent=5 // pred_check_branch
        %1199 = sbr.rel (%p1197) target = $region104
      $region103: #{tpu_custom_call.1} parent=5 // pred_region
        %s1200 = ssub.s32 %s29, 2
        // Predicated region
        $region105: #{tpu_custom_call.1} parent=103 // pred_check
          %p1201 = pneg %p399
        $region106: #{tpu_custom_call.1} parent=103 // pred_check_branch
          %1203 = sbr.rel (%p1201) target = $region108
        $region107: #{tpu_custom_call.1} parent=103 // pred_region
          %s1204 = sand.u32 %s384, 1
          %s1205 = scalar_lea.sflag [#allocation5], %s1204
          %s1206 = sand.u32 %s384, 1
          %s1207 = smul.addr %s1206, 8
          %s1208 = scalar_lea.vmem [#allocation9], %s1207
          %1210 = dma.done %s1205, 128
        $region108: #{tpu_custom_call.1} parent=103 // pred_fallthru
          _
      $region104: #{tpu_custom_call.1} parent=5 // pred_fallthru
        _
    $region6: #{tpu_custom_call.1} parent=1 // loop_footer
      %s33 = sadd.s32 1, %s29
    $region7: #{tpu_custom_call.1} parent=1 // loop_footer_branch
      %28 = sbr.rel target = $region3
    $region8: #{tpu_custom_call.1} parent=1 // loop_exit
      _
    %1211 = vsyncpa [#allocation4], 1
    %s1212 = scalar_lea.sflag [#allocation4], 1
    %1213 = vsyncpa %s1212, 1
    %1214 = vsyncpa [#allocation7], 1
    %1215 = vsyncpa [#allocation5], 1
    %s1216 = scalar_lea.sflag [#allocation5], 1
    %1217 = vsyncpa %s1216, 1

</llo_original>
